<compile_context>
chip_gen: v7x
topology: tpu7x:2x2x1
jax: 0.10.0
libtpu: 0.0.40
codegen_flags: <defaults>
</compile_context>

<pallas_src>
import functools
import math

import jax
import jax.numpy as jnp
from jax.experimental import pallas as pl
from jax.experimental.pallas import tpu as pltpu


COMPUTE_DTYPE = jnp.bfloat16        # matmul input dtype (f32 accumulation)
ROW_TILE = 512                      # preferred row (M) tile
COL_TILE = 512                      # preferred column (N) tile
VMEM_LIMIT = 48 * 1024 * 1024       # explicit scoped-VMEM limit (all gens)


def _cparams(sem):
    return pltpu.CompilerParams(dimension_semantics=sem,
                                vmem_limit_bytes=VMEM_LIMIT)


def _round_up(x, m):
    return ((x + m - 1) // m) * m


def _row_tile(M, pref=ROW_TILE):
    """Row tile: pref if M is large, else M rounded up to a sublane multiple."""
    if M >= pref:
        return pref
    return max(8, _round_up(M, 8))


def _col_tile(N, pref=COL_TILE):
    """Largest 128-multiple <= pref dividing N; full N if small / awkward."""
    if N <= pref:
        return N
    t = (pref // 128) * 128
    while t >= 128:
        if N % t == 0:
            return t
        t -= 128
    return N


def _pad_rows(x, mp):
    if x.shape[0] == mp:
        return x
    pad = [(0, mp - x.shape[0])] + [(0, 0)] * (x.ndim - 1)
    return jnp.pad(x, pad)


# ----------------------------------------------------------------------------
# Linear (full-K block, optional GELU epilogue)
# ----------------------------------------------------------------------------

def _linear_kernel(x_ref, w_ref, b_ref, o_ref, *, activation):
    x = x_ref[...].astype(w_ref.dtype)                       # bf16 MXU inputs
    y = jnp.dot(x, w_ref[...], preferred_element_type=jnp.float32) + b_ref[...]
    if activation == "gelu":
        # TODO(synk): PyTorch nn.GELU defaults to exact erf; tanh approx here.
        y = jax.nn.gelu(y, approximate=True)
    o_ref[...] = y.astype(o_ref.dtype)


def linear(x, w, b, activation=None, out_dtype=jnp.float32):
    """x: [M, K] @ w: [K, N] + b: [N] -> [M, N] (bf16 MXU, f32 accumulation)."""
    M, K = x.shape
    K2, N = w.shape
    assert K == K2
    tm = _row_tile(M)
    mp = _round_up(M, tm)
    tn = _col_tile(N)
    xp = _pad_rows(x, mp)
    out = pl.pallas_call(
        functools.partial(_linear_kernel, activation=activation),
        out_shape=jax.ShapeDtypeStruct((mp, N), out_dtype),
        grid=(mp // tm, N // tn),
        in_specs=[
            pl.BlockSpec((tm, K), lambda i, j: (i, 0)),
            pl.BlockSpec((K, tn), lambda i, j: (0, j)),
            pl.BlockSpec((1, tn), lambda i, j: (0, j)),
        ],
        out_specs=pl.BlockSpec((tm, tn), lambda i, j: (i, j)),
        compiler_params=_cparams(("parallel", "parallel")),
    )(xp, w, b.reshape(1, N))
    return out if mp == M else out[:M]


# ----------------------------------------------------------------------------
# Linear fused with bias + residual-add + LayerNorm epilogue (full-K, full-N)
# ----------------------------------------------------------------------------

def _linear_res_ln_kernel(x_ref, w_ref, b_ref, r_ref, g_ref, be_ref, o_ref,
                          *, eps):
    x = x_ref[...].astype(w_ref.dtype)
    y = jnp.dot(x, w_ref[...], preferred_element_type=jnp.float32)
    y = y + b_ref[...] + r_ref[...]
    mu = jnp.mean(y, axis=-1, keepdims=True)
    var = jnp.mean((y - mu) * (y - mu), axis=-1, keepdims=True)
    o_ref[...] = ((y - mu) * jax.lax.rsqrt(var + eps)
                  * g_ref[...] + be_ref[...]).astype(o_ref.dtype)


def linear_residual_layernorm(x, w, b, residual, gamma, beta, eps=1e-5):
    """LayerNorm((x @ w + b) + residual) over the last axis (N un-tiled)."""
    M, K = x.shape
    K2, N = w.shape
    assert K == K2 and residual.shape == (M, N)
    tm = _row_tile(M)
    mp = _round_up(M, tm)
    xp = _pad_rows(x, mp)
    rp = _pad_rows(residual, mp)
    out = pl.pallas_call(
        functools.partial(_linear_res_ln_kernel, eps=eps),
        out_shape=jax.ShapeDtypeStruct((mp, N), jnp.float32),
        grid=(mp // tm,),
        in_specs=[
            pl.BlockSpec((tm, K), lambda i: (i, 0)),
            pl.BlockSpec((K, N), lambda i: (0, 0)),
            pl.BlockSpec((1, N), lambda i: (0, 0)),
            pl.BlockSpec((tm, N), lambda i: (i, 0)),
            pl.BlockSpec((1, N), lambda i: (0, 0)),
            pl.BlockSpec((1, N), lambda i: (0, 0)),
        ],
        out_specs=pl.BlockSpec((tm, N), lambda i: (i, 0)),
        compiler_params=_cparams(("parallel",)),
    )(xp, w, b.reshape(1, N), rp, gamma.reshape(1, N), beta.reshape(1, N))
    return out if mp == M else out[:M]


# ----------------------------------------------------------------------------
# Standalone LayerNorm (embedding LN only)
# ----------------------------------------------------------------------------

def _layernorm_kernel(x_ref, g_ref, b_ref, o_ref, *, eps):
    x = x_ref[...]
    mu = jnp.mean(x, axis=-1, keepdims=True)
    var = jnp.mean((x - mu) * (x - mu), axis=-1, keepdims=True)
    o_ref[...] = (x - mu) * jax.lax.rsqrt(var + eps) * g_ref[...] + b_ref[...]


def layernorm(x, gamma, beta, eps=1e-5):
    M, H = x.shape
    tm = _row_tile(M)
    mp = _round_up(M, tm)
    xp = _pad_rows(x, mp)
    out = pl.pallas_call(
        functools.partial(_layernorm_kernel, eps=eps),
        out_shape=jax.ShapeDtypeStruct((mp, H), jnp.float32),
        grid=(mp // tm,),
        in_specs=[
            pl.BlockSpec((tm, H), lambda i: (i, 0)),
            pl.BlockSpec((1, H), lambda i: (0, 0)),
            pl.BlockSpec((1, H), lambda i: (0, 0)),
        ],
        out_specs=pl.BlockSpec((tm, H), lambda i: (i, 0)),
        compiler_params=_cparams(("parallel",)),
    )(xp, gamma.reshape(1, H), beta.reshape(1, H))
    return out if mp == M else out[:M]


# ----------------------------------------------------------------------------
# Multi-head attention straight from the fused [B, S, 3H] QKV tensor.
#   grid=(B,): one DMA of (S, 3H) per batch, static per-head loop inside,
#   single lane-dense (S, H) head-concatenated store -> no splits/transposes.
# ----------------------------------------------------------------------------

def _mha_kernel(qkv_ref, m_ref, o_ref, *, num_heads, head_dim, scale):
    H = num_heads * head_dim
    neg = m_ref[0]                                        # (1, S) additive mask
    outs = []
    for h in range(num_heads):
        q = qkv_ref[0, :, h * head_dim:(h + 1) * head_dim]            # (S, hd)
        k = qkv_ref[0, :, H + h * head_dim:H + (h + 1) * head_dim]
        v = qkv_ref[0, :, 2 * H + h * head_dim:2 * H + (h + 1) * head_dim]
        s = jax.lax.dot_general(q, k, (((1,), (1,)), ((), ())),
                                preferred_element_type=jnp.float32) * scale
        s = s + neg
        s = s - jnp.max(s, axis=-1, keepdims=True)
        p = jnp.exp(s)
        p = p * pl.reciprocal(jnp.sum(p, axis=-1, keepdims=True), approx=True)
        outs.append(jnp.dot(p.astype(v.dtype), v,
                            preferred_element_type=jnp.float32))
    o_ref[0] = jnp.concatenate(outs, axis=-1).astype(o_ref.dtype)


def multi_head_attention(qkv, neg_mask, num_heads):
    """qkv: [B, S, 3H] bf16; neg_mask: [B, 1, S] additive -> [B, S, H] bf16."""
    B, S, H3 = qkv.shape
    H = H3 // 3
    hd = H // num_heads
    scale = 1.0 / math.sqrt(hd)
    return pl.pallas_call(
        functools.partial(_mha_kernel, num_heads=num_heads, head_dim=hd,
                          scale=scale),
        out_shape=jax.ShapeDtypeStruct((B, S, H), jnp.bfloat16),
        grid=(B,),
        in_specs=[
            pl.BlockSpec((1, S, H3), lambda b: (b, 0, 0)),
            pl.BlockSpec((1, 1, S), lambda b: (b, 0, 0)),
        ],
        out_specs=pl.BlockSpec((1, S, H), lambda b: (b, 0, 0)),
        compiler_params=_cparams(("parallel",)),
    )(qkv, neg_mask)


# ----------------------------------------------------------------------------
# Fused visual attention + classifier, tiled over batch.
#   vis = proj_v(feat); att_vis = attention(vis, output);
#   logits = classifier(concat(att_vis, text_repre))
# ----------------------------------------------------------------------------

def _vis_cls_kernel(feat_ref, pw_ref, pb_ref, hs_ref, wa_ref, txt_ref,
                    cwv_ref, cwt_ref, cb_ref, o_ref, *, scale):
    cdt = pw_ref.dtype                                            # bf16
    feat = feat_ref[...].astype(cdt)
    vis = jnp.dot(feat, pw_ref[...],
                  preferred_element_type=jnp.float32) + pb_ref[...]      # (b, H)
    q = jnp.dot(vis.astype(cdt), wa_ref[...],
                preferred_element_type=jnp.float32)[:, None, :]          # (b,1,H)
    hs = hs_ref[...].astype(cdt)                                         # (b,S,H)
    scores = jnp.einsum("bqh,bsh->bqs", q.astype(cdt), hs,
                        preferred_element_type=jnp.float32) * scale      # (b,1,S)
    scores = scores - jnp.max(scores, axis=-1, keepdims=True)
    p = jnp.exp(scores)
    p = p * pl.reciprocal(jnp.sum(p, axis=-1, keepdims=True), approx=True)
    att_vis = jnp.einsum("bqs,bsh->bqh", p.astype(cdt), hs,
                         preferred_element_type=jnp.float32)[:, 0, :]    # (b, H)
    # concat(att_vis, text_repre) @ cls_w == att_vis @ cls_w[:H] + text @ cls_w[H:]
    logits = (jnp.dot(att_vis.astype(cdt), cwv_ref[...],
                      preferred_element_type=jnp.float32)
              + jnp.dot(txt_ref[...].astype(cdt), cwt_ref[...],
                        preferred_element_type=jnp.float32)
              + cb_ref[...])
    o_ref[...] = logits


def vis_attention_classifier(feat, hidden_states, text_repre, params):
    B, S, H = hidden_states.shape
    Dv = feat.shape[1]
    C = params["cls_b"].shape[0]
    scale = 1.0 / math.sqrt(H)
    cls_w_v = params["cls_w"][:H]          # [H, C]
    cls_w_t = params["cls_w"][H:]          # [H, C]
    bb = 8 if (B % 8 == 0) else B          # batch tile (keeps hs block small)
    return pl.pallas_call(
        functools.partial(_vis_cls_kernel, scale=scale),
        out_shape=jax.ShapeDtypeStruct((B, C), jnp.float32),
        grid=(B // bb,),
        in_specs=[
            pl.BlockSpec((bb, Dv), lambda i: (i, 0)),
            pl.BlockSpec((Dv, H), lambda i: (0, 0)),
            pl.BlockSpec((1, H), lambda i: (0, 0)),
            pl.BlockSpec((bb, S, H), lambda i: (i, 0, 0)),
            pl.BlockSpec((H, H), lambda i: (0, 0)),
            pl.BlockSpec((bb, H), lambda i: (i, 0)),
            pl.BlockSpec((H, C), lambda i: (0, 0)),
            pl.BlockSpec((H, C), lambda i: (0, 0)),
            pl.BlockSpec((1, C), lambda i: (0, 0)),
        ],
        out_specs=pl.BlockSpec((bb, C), lambda i: (i, 0)),
        compiler_params=_cparams(("parallel",)),
    )(feat, params["proj_v_w"], params["proj_v_b"].reshape(1, H),
      hidden_states, params["att_wa"], text_repre,
      cls_w_v, cls_w_t, params["cls_b"].reshape(1, C))


# ----------------------------------------------------------------------------
# Parameter construction (deterministic, synthetic; matmul weights in bf16)
# ----------------------------------------------------------------------------

def init_params(key, *, vocab, max_pos, hidden, ffn, num_layers, feat_dim,
                num_classes):
    keys = iter(jax.random.split(key, 128))
    nrm = lambda shape, s=0.02: (s * jax.random.normal(next(keys), shape)
                                 ).astype(jnp.float32)
    wgt = lambda shape: nrm(shape).astype(COMPUTE_DTYPE)
    p = {
        "word_emb": nrm((vocab, hidden)),
        # TODO(synk): real RoBERTa offsets positions by padding_idx+1; synthetic here.
        "pos_emb": nrm((max_pos, hidden)),
        "emb_ln_g": jnp.ones((hidden,), jnp.float32),
        "emb_ln_b": jnp.zeros((hidden,), jnp.float32),
        "layers": [],
        # proj_v : Linear(feat_dim -> hidden)
        "proj_v_w": wgt((feat_dim, hidden)),
        "proj_v_b": jnp.zeros((hidden,), jnp.float32),
        # attention module: score projection
        "att_wa": wgt((hidden, hidden)),
        # classifier : Linear(2*hidden -> num_classes)
        "cls_w": wgt((2 * hidden, num_classes)),
        "cls_b": jnp.zeros((num_classes,), jnp.float32),
    }
    for _ in range(num_layers):
        p["layers"].append({
            # fused Q|K|V projection
            "wqkv": wgt((hidden, 3 * hidden)),
            "bqkv": jnp.zeros((3 * hidden,), jnp.float32),
            "wo": wgt((hidden, hidden)),
            "bo": jnp.zeros((hidden,), jnp.float32),
            "ln1_g": jnp.ones((hidden,), jnp.float32),
            "ln1_b": jnp.zeros((hidden,), jnp.float32),
            "w1": wgt((hidden, ffn)), "b1": jnp.zeros((ffn,), jnp.float32),
            "w2": wgt((ffn, hidden)), "b2": jnp.zeros((hidden,), jnp.float32),
            "ln2_g": jnp.ones((hidden,), jnp.float32),
            "ln2_b": jnp.zeros((hidden,), jnp.float32),
        })
    return p


# ----------------------------------------------------------------------------
# Forward pass (mirrors RobertaBaseModel.forward)
# ----------------------------------------------------------------------------

def roberta_encoder(params, tokens, attention_mask, *, num_heads):
    B, S = tokens.shape
    H = params["word_emb"].shape[1]
    # Embedding lookup (glue) + embedding LayerNorm.
    x = jnp.take(params["word_emb"], tokens, axis=0) + params["pos_emb"][None, :S]
    x2d = layernorm(x.reshape(B * S, H), params["emb_ln_g"], params["emb_ln_b"])
    # Additive key mask computed ONCE for all layers/heads.
    neg_mask = ((1.0 - attention_mask.astype(jnp.float32)) * (-1e9)
                ).reshape(B, 1, S)
    for lyr in params["layers"]:
        # --- self attention: fused QKV matmul, bf16 activation out ---
        qkv = linear(x2d, lyr["wqkv"], lyr["bqkv"],
                     out_dtype=COMPUTE_DTYPE)                    # [B*S, 3H] bf16
        attn = multi_head_attention(qkv.reshape(B, S, 3 * H),
                                    neg_mask, num_heads)         # [B, S, H] bf16
        # output projection fused with residual-add + LayerNorm (f32 stream)
        x2d = linear_residual_layernorm(attn.reshape(B * S, H), lyr["wo"],
                                        lyr["bo"], x2d,
                                        lyr["ln1_g"], lyr["ln1_b"])
        # --- feed forward: w1+GELU (bf16 out), w2 fused with residual + LN ---
        h = linear(x2d, lyr["w1"], lyr["b1"], activation="gelu",
                   out_dtype=COMPUTE_DTYPE)                      # [B*S, FFN] bf16
        x2d = linear_residual_layernorm(h, lyr["w2"], lyr["b2"], x2d,
                                        lyr["ln2_g"], lyr["ln2_b"])
    return x2d.reshape(B, S, H)


def roberta_base_model_forward(params, tokens, attention_mask, feat=None,
                               *, num_heads=2):
    # output = self.text_encoder(tokens, attention_mask=attention_mask)[0]
    output = roberta_encoder(params, tokens, attention_mask, num_heads=num_heads)
    if feat is None:
        # TODO(synk): text-only branch needs a Linear(H -> C) classifier;
        # demo exercises the multimodal (feat != None) branch only.
        raise NotImplementedError("demo exercises the feat != None branch")
    text_repre = output[:, 0]                                        # [B, H]
    # proj_v(feat), attention(vis, output), concat, classifier — one fused kernel.
    logits = vis_attention_classifier(feat, output, text_repre, params)
    return logits


# ----------------------------------------------------------------------------
# Demo
# ----------------------------------------------------------------------------

if __name__ == "__main__":
    B, S = 2, 8
    VOCAB, H, NUM_HEADS, FFN, LAYERS = 50, 32, 2, 64, 2
    FEAT_DIM, NUM_CLASSES = 48, 2

    key = jax.random.PRNGKey(0)
    k_param, k_tok, k_feat = jax.random.split(key, 3)

    params = init_params(k_param, vocab=VOCAB, max_pos=S, hidden=H, ffn=FFN,
                         num_layers=LAYERS, feat_dim=FEAT_DIM,
                         num_classes=NUM_CLASSES)

    tokens = jax.random.randint(k_tok, (B, S), 0, VOCAB, dtype=jnp.int32)
    attention_mask = jnp.array(
        [[1, 1, 1, 1, 1, 1, 1, 1],
         [1, 1, 1, 1, 1, 0, 0, 0]], dtype=jnp.float32)
    feat = jax.random.normal(k_feat, (B, FEAT_DIM), dtype=jnp.float32)

    fwd = jax.jit(functools.partial(roberta_base_model_forward,
                                    num_heads=NUM_HEADS))
    logits = fwd(params, tokens, attention_mask, feat)
    logits = jax.block_until_ready(logits)
    assert logits.shape == (B, NUM_CLASSES)
    assert bool(jnp.all(jnp.isfinite(logits)))
    print("KERNEL_OK")
</pallas_src>

<mosaic_0001>
module attributes {stable_mosaic.version = 11 : i64} {
  func.func @_layernorm_kernel(%arg0: i32, %arg1: memref<16x32xf32, #tpu.memory_space<vmem>>, %arg2: memref<1x32xf32, #tpu.memory_space<vmem>>, %arg3: memref<1x32xf32, #tpu.memory_space<vmem>>, %arg4: memref<16x32xf32, #tpu.memory_space<vmem>>) attributes {dimension_semantics = [#tpu.dimension_semantics<parallel>], iteration_bounds = array<i64: 1>, scalar_prefetch = 0 : i64, scratch_operands = 0 : i64, tpu.core_type = #tpu.core_type<tc>, window_params = [{transform_indices = @transform_0, window_bounds = array<i64: 16, 32>}, {pipeline_mode = #tpu.pipeline_mode<synchronous>, transform_indices = @transform_1, window_bounds = array<i64: 1, 32>}, {pipeline_mode = #tpu.pipeline_mode<synchronous>, transform_indices = @transform_2, window_bounds = array<i64: 1, 32>}, {transform_indices = @transform_3, window_bounds = array<i64: 16, 32>}]} {
    %c0 = arith.constant 0 : index
    %c0_0 = arith.constant 0 : index
    %0 = vector.load %arg1[%c0, %c0_0] : memref<16x32xf32, #tpu.memory_space<vmem>>, vector<16x32xf32>
    %cst = arith.constant dense<0.000000e+00> : vector<16xf32>
    %1 = vector.multi_reduction <add>, %0, %cst [1] : vector<16x32xf32> to vector<16xf32>
    %2 = vector.shape_cast %1 : vector<16xf32> to vector<16x1xf32>
    %cst_1 = arith.constant 3.200000e+01 : f32
    %3 = vector.broadcast %cst_1 : f32 to vector<16x1xf32>
    %4 = arith.divf %2, %3 : vector<16x1xf32>
    %5 = vector.broadcast %4 : vector<16x1xf32> to vector<16x32xf32>
    %6 = arith.subf %0, %5 : vector<16x32xf32>
    %7 = vector.broadcast %4 : vector<16x1xf32> to vector<16x32xf32>
    %8 = arith.subf %0, %7 : vector<16x32xf32>
    %9 = arith.mulf %6, %8 : vector<16x32xf32>
    %cst_2 = arith.constant dense<0.000000e+00> : vector<16xf32>
    %10 = vector.multi_reduction <add>, %9, %cst_2 [1] : vector<16x32xf32> to vector<16xf32>
    %11 = vector.shape_cast %10 : vector<16xf32> to vector<16x1xf32>
    %cst_3 = arith.constant 3.200000e+01 : f32
    %12 = vector.broadcast %cst_3 : f32 to vector<16x1xf32>
    %13 = arith.divf %11, %12 : vector<16x1xf32>
    %14 = vector.broadcast %4 : vector<16x1xf32> to vector<16x32xf32>
    %15 = arith.subf %0, %14 : vector<16x32xf32>
    %cst_4 = arith.constant 9.99999974E-6 : f32
    %16 = vector.broadcast %cst_4 : f32 to vector<16x1xf32>
    %17 = arith.addf %13, %16 : vector<16x1xf32>
    %18 = math.rsqrt %17 : vector<16x1xf32>
    %19 = vector.broadcast %18 : vector<16x1xf32> to vector<16x32xf32>
    %20 = arith.mulf %15, %19 : vector<16x32xf32>
    %c0_5 = arith.constant 0 : index
    %c0_6 = arith.constant 0 : index
    %21 = vector.load %arg2[%c0_5, %c0_6] : memref<1x32xf32, #tpu.memory_space<vmem>>, vector<1x32xf32>
    %22 = vector.broadcast %21 : vector<1x32xf32> to vector<16x32xf32>
    %23 = arith.mulf %20, %22 : vector<16x32xf32>
    %c0_7 = arith.constant 0 : index
    %c0_8 = arith.constant 0 : index
    %24 = vector.load %arg3[%c0_7, %c0_8] : memref<1x32xf32, #tpu.memory_space<vmem>>, vector<1x32xf32>
    %25 = vector.broadcast %24 : vector<1x32xf32> to vector<16x32xf32>
    %26 = arith.addf %23, %25 : vector<16x32xf32>
    %c0_9 = arith.constant 0 : index
    %c0_10 = arith.constant 0 : index
    %27 = vector.load %arg4[%c0_9, %c0_10] : memref<16x32xf32, #tpu.memory_space<vmem>>, vector<16x32xf32>
    tpu.vector_store %arg4[%c0_9, %c0_10], %26 {strides = array<i32>} : memref<16x32xf32, #tpu.memory_space<vmem>>, vector<16x32xf32>,
    return
  }
  func.func @transform_0(%arg0: i32) -> (i32, i32) {
    %c0_i32 = arith.constant 0 : i32
    %c0_i32_0 = arith.constant 0 : i32
    return %arg0, %c0_i32 : i32, i32
  }
  func.func @transform_1(%arg0: i32) -> (i32, i32) {
    %c0_i32 = arith.constant 0 : i32
    %c0_i32_0 = arith.constant 0 : i32
    %c0_i32_1 = arith.constant 0 : i32
    return %c0_i32, %c0_i32_0 : i32, i32
  }
  func.func @transform_2(%arg0: i32) -> (i32, i32) {
    %c0_i32 = arith.constant 0 : i32
    %c0_i32_0 = arith.constant 0 : i32
    %c0_i32_1 = arith.constant 0 : i32
    return %c0_i32, %c0_i32_0 : i32, i32
  }
  func.func @transform_3(%arg0: i32) -> (i32, i32) {
    %c0_i32 = arith.constant 0 : i32
    %c0_i32_0 = arith.constant 0 : i32
    return %arg0, %c0_i32 : i32, i32
  }
}

module attributes {stable_mosaic.version = 11 : i64} {
  func.func @_linear_kernel(%arg0: i32, %arg1: i32, %arg2: memref<16x32xf32, #tpu.memory_space<vmem>>, %arg3: memref<32x96xbf16, #tpu.memory_space<vmem>>, %arg4: memref<1x96xf32, #tpu.memory_space<vmem>>, %arg5: memref<16x96xbf16, #tpu.memory_space<vmem>>) attributes {dimension_semantics = [#tpu.dimension_semantics<parallel>, #tpu.dimension_semantics<parallel>], iteration_bounds = array<i64: 1, 1>, scalar_prefetch = 0 : i64, scratch_operands = 0 : i64, tpu.core_type = #tpu.core_type<tc>, window_params = [{transform_indices = @transform_0, window_bounds = array<i64: 16, 32>}, {transform_indices = @transform_1, window_bounds = array<i64: 32, 96>}, {transform_indices = @transform_2, window_bounds = array<i64: 1, 96>}, {transform_indices = @transform_3, window_bounds = array<i64: 16, 96>}]} {
    %c0 = arith.constant 0 : index
    %c0_0 = arith.constant 0 : index
    %0 = vector.load %arg2[%c0, %c0_0] : memref<16x32xf32, #tpu.memory_space<vmem>>, vector<16x32xf32>
    %1 = arith.truncf %0 : vector<16x32xf32> to vector<16x32xbf16>
    %c0_1 = arith.constant 0 : index
    %c0_2 = arith.constant 0 : index
    %2 = vector.load %arg3[%c0_1, %c0_2] : memref<32x96xbf16, #tpu.memory_space<vmem>>, vector<32x96xbf16>
    %cst = arith.constant dense<0.000000e+00> : vector<16x96xf32>
    %3 = tpu.matmul %1, %2, %cst {dimension_numbers = #tpu.dot_dimension_numbers<[1], [0], [0], [1], [0, 0, 1, 1], [], []>} : vector<16x32xbf16>, vector<32x96xbf16>, vector<16x96xf32> -> vector<16x96xf32>
    %c0_3 = arith.constant 0 : index
    %c0_4 = arith.constant 0 : index
    %4 = vector.load %arg4[%c0_3, %c0_4] : memref<1x96xf32, #tpu.memory_space<vmem>>, vector<1x96xf32>
    %5 = vector.broadcast %4 : vector<1x96xf32> to vector<16x96xf32>
    %6 = arith.addf %3, %5 : vector<16x96xf32>
    %7 = arith.truncf %6 : vector<16x96xf32> to vector<16x96xbf16>
    %c0_5 = arith.constant 0 : index
    %c0_6 = arith.constant 0 : index
    %8 = vector.load %arg5[%c0_5, %c0_6] : memref<16x96xbf16, #tpu.memory_space<vmem>>, vector<16x96xbf16>
    tpu.vector_store %arg5[%c0_5, %c0_6], %7 {strides = array<i32>} : memref<16x96xbf16, #tpu.memory_space<vmem>>, vector<16x96xbf16>,
    return
  }
  func.func @transform_0(%arg0: i32, %arg1: i32) -> (i32, i32) {
    %c0_i32 = arith.constant 0 : i32
    %c0_i32_0 = arith.constant 0 : i32
    return %arg0, %c0_i32 : i32, i32
  }
  func.func @transform_1(%arg0: i32, %arg1: i32) -> (i32, i32) {
    %c0_i32 = arith.constant 0 : i32
    %c0_i32_0 = arith.constant 0 : i32
    return %c0_i32, %arg1 : i32, i32
  }
  func.func @transform_2(%arg0: i32, %arg1: i32) -> (i32, i32) {
    %c0_i32 = arith.constant 0 : i32
    %c0_i32_0 = arith.constant 0 : i32
    return %c0_i32, %arg1 : i32, i32
  }
  func.func @transform_3(%arg0: i32, %arg1: i32) -> (i32, i32) {
    %c0_i32 = arith.constant 0 : i32
    return %arg0, %arg1 : i32, i32
  }
}

module attributes {stable_mosaic.version = 11 : i64} {
  func.func @_mha_kernel(%arg0: i32, %arg1: memref<1x8x96xbf16, #tpu.memory_space<vmem>>, %arg2: memref<1x1x8xf32, #tpu.memory_space<vmem>>, %arg3: memref<1x8x32xbf16, #tpu.memory_space<vmem>>) attributes {dimension_semantics = [#tpu.dimension_semantics<parallel>], iteration_bounds = array<i64: 2>, scalar_prefetch = 0 : i64, scratch_operands = 0 : i64, tpu.core_type = #tpu.core_type<tc>, window_params = [{transform_indices = @transform_0, window_bounds = array<i64: 1, 8, 96>}, {transform_indices = @transform_1, window_bounds = array<i64: 1, 1, 8>}, {transform_indices = @transform_2, window_bounds = array<i64: 1, 8, 32>}]} {
    %c0 = arith.constant 0 : index
    %c0_0 = arith.constant 0 : index
    %c0_1 = arith.constant 0 : index
    %0 = vector.load %arg2[%c0, %c0_0, %c0_1] : memref<1x1x8xf32, #tpu.memory_space<vmem>>, vector<1x1x8xf32>
    %1 = vector.shape_cast %0 : vector<1x1x8xf32> to vector<1x8xf32>
    %c0_2 = arith.constant 0 : index
    %c0_3 = arith.constant 0 : index
    %c0_4 = arith.constant 0 : index
    %2 = vector.load %arg1[%c0_2, %c0_3, %c0_4] : memref<1x8x96xbf16, #tpu.memory_space<vmem>>, vector<1x8x16xbf16>
    %3 = vector.shape_cast %2 : vector<1x8x16xbf16> to vector<8x16xbf16>
    %c0_5 = arith.constant 0 : index
    %c0_6 = arith.constant 0 : index
    %c32 = arith.constant 32 : index
    %4 = vector.load %arg1[%c0_5, %c0_6, %c32] : memref<1x8x96xbf16, #tpu.memory_space<vmem>>, vector<1x8x16xbf16>
    %5 = vector.shape_cast %4 : vector<1x8x16xbf16> to vector<8x16xbf16>
    %c0_7 = arith.constant 0 : index
    %c0_8 = arith.constant 0 : index
    %c64 = arith.constant 64 : index
    %6 = vector.load %arg1[%c0_7, %c0_8, %c64] : memref<1x8x96xbf16, #tpu.memory_space<vmem>>, vector<1x8x16xbf16>
    %7 = vector.shape_cast %6 : vector<1x8x16xbf16> to vector<8x16xbf16>
    %cst = arith.constant dense<0.000000e+00> : vector<8x8xf32>
    %8 = tpu.matmul %3, %5, %cst {dimension_numbers = #tpu.dot_dimension_numbers<[1], [1], [0], [0], [0, 0, 1, 0], [], []>} : vector<8x16xbf16>, vector<8x16xbf16>, vector<8x8xf32> -> vector<8x8xf32>
    %cst_9 = arith.constant 2.500000e-01 : f32
    %9 = vector.broadcast %cst_9 : f32 to vector<8x8xf32>
    %10 = arith.mulf %8, %9 : vector<8x8xf32>
    %11 = vector.broadcast %1 : vector<1x8xf32> to vector<8x8xf32>
    %12 = arith.addf %10, %11 : vector<8x8xf32>
    %cst_10 = arith.constant dense<0xFF800000> : vector<8xf32>
    %13 = vector.multi_reduction <maximumf>, %12, %cst_10 [1] : vector<8x8xf32> to vector<8xf32>
    %14 = vector.shape_cast %13 : vector<8xf32> to vector<8x1xf32>
    %15 = vector.broadcast %14 : vector<8x1xf32> to vector<8x8xf32>
    %16 = arith.subf %12, %15 : vector<8x8xf32>
    %17 = math.exp %16 : vector<8x8xf32>
    %cst_11 = arith.constant dense<0.000000e+00> : vector<8xf32>
    %18 = vector.multi_reduction <add>, %17, %cst_11 [1] : vector<8x8xf32> to vector<8xf32>
    %19 = vector.shape_cast %18 : vector<8xf32> to vector<8x1xf32>
    %20 = tpu.reciprocal %19 {approx = true} : vector<8x1xf32> -> vector<8x1xf32>
    %21 = vector.broadcast %20 : vector<8x1xf32> to vector<8x8xf32>
    %22 = arith.mulf %17, %21 : vector<8x8xf32>
    %23 = arith.truncf %22 : vector<8x8xf32> to vector<8x8xbf16>
    %cst_12 = arith.constant dense<0.000000e+00> : vector<8x16xf32>
    %24 = tpu.matmul %23, %7, %cst_12 {dimension_numbers = #tpu.dot_dimension_numbers<[1], [0], [0], [1], [0, 0, 1, 1], [], []>} : vector<8x8xbf16>, vector<8x16xbf16>, vector<8x16xf32> -> vector<8x16xf32>
    %c0_13 = arith.constant 0 : index
    %c0_14 = arith.constant 0 : index
    %c16 = arith.constant 16 : index
    %25 = vector.load %arg1[%c0_13, %c0_14, %c16] : memref<1x8x96xbf16, #tpu.memory_space<vmem>>, vector<1x8x16xbf16>
    %26 = vector.shape_cast %25 : vector<1x8x16xbf16> to vector<8x16xbf16>
    %c0_15 = arith.constant 0 : index
    %c0_16 = arith.constant 0 : index
    %c48 = arith.constant 48 : index
    %27 = vector.load %arg1[%c0_15, %c0_16, %c48] : memref<1x8x96xbf16, #tpu.memory_space<vmem>>, vector<1x8x16xbf16>
    %28 = vector.shape_cast %27 : vector<1x8x16xbf16> to vector<8x16xbf16>
    %c0_17 = arith.constant 0 : index
    %c0_18 = arith.constant 0 : index
    %c80 = arith.constant 80 : index
    %29 = vector.load %arg1[%c0_17, %c0_18, %c80] : memref<1x8x96xbf16, #tpu.memory_space<vmem>>, vector<1x8x16xbf16>
    %30 = vector.shape_cast %29 : vector<1x8x16xbf16> to vector<8x16xbf16>
    %cst_19 = arith.constant dense<0.000000e+00> : vector<8x8xf32>
    %31 = tpu.matmul %26, %28, %cst_19 {dimension_numbers = #tpu.dot_dimension_numbers<[1], [1], [0], [0], [0, 0, 1, 0], [], []>} : vector<8x16xbf16>, vector<8x16xbf16>, vector<8x8xf32> -> vector<8x8xf32>
    %cst_20 = arith.constant 2.500000e-01 : f32
    %32 = vector.broadcast %cst_20 : f32 to vector<8x8xf32>
    %33 = arith.mulf %31, %32 : vector<8x8xf32>
    %34 = vector.broadcast %1 : vector<1x8xf32> to vector<8x8xf32>
    %35 = arith.addf %33, %34 : vector<8x8xf32>
    %cst_21 = arith.constant dense<0xFF800000> : vector<8xf32>
    %36 = vector.multi_reduction <maximumf>, %35, %cst_21 [1] : vector<8x8xf32> to vector<8xf32>
    %37 = vector.shape_cast %36 : vector<8xf32> to vector<8x1xf32>
    %38 = vector.broadcast %37 : vector<8x1xf32> to vector<8x8xf32>
    %39 = arith.subf %35, %38 : vector<8x8xf32>
    %40 = math.exp %39 : vector<8x8xf32>
    %cst_22 = arith.constant dense<0.000000e+00> : vector<8xf32>
    %41 = vector.multi_reduction <add>, %40, %cst_22 [1] : vector<8x8xf32> to vector<8xf32>
    %42 = vector.shape_cast %41 : vector<8xf32> to vector<8x1xf32>
    %43 = tpu.reciprocal %42 {approx = true} : vector<8x1xf32> -> vector<8x1xf32>
    %44 = vector.broadcast %43 : vector<8x1xf32> to vector<8x8xf32>
    %45 = arith.mulf %40, %44 : vector<8x8xf32>
    %46 = arith.truncf %45 : vector<8x8xf32> to vector<8x8xbf16>
    %cst_23 = arith.constant dense<0.000000e+00> : vector<8x16xf32>
    %47 = tpu.matmul %46, %30, %cst_23 {dimension_numbers = #tpu.dot_dimension_numbers<[1], [0], [0], [1], [0, 0, 1, 1], [], []>} : vector<8x8xbf16>, vector<8x16xbf16>, vector<8x16xf32> -> vector<8x16xf32>
    %48 = tpu.concatenate %24, %47 in 1 : vector<8x16xf32>, vector<8x16xf32> -> vector<8x32xf32>
    %49 = arith.truncf %48 : vector<8x32xf32> to vector<8x32xbf16>
    %c0_24 = arith.constant 0 : index
    %c0_25 = arith.constant 0 : index
    %c0_26 = arith.constant 0 : index
    %50 = vector.load %arg3[%c0_24, %c0_25, %c0_26] : memref<1x8x32xbf16, #tpu.memory_space<vmem>>, vector<1x8x32xbf16>
    %51 = vector.shape_cast %50 : vector<1x8x32xbf16> to vector<8x32xbf16>
    %52 = vector.shape_cast %49 : vector<8x32xbf16> to vector<1x8x32xbf16>
    tpu.vector_store %arg3[%c0_24, %c0_25, %c0_26], %52 {strides = array<i32>} : memref<1x8x32xbf16, #tpu.memory_space<vmem>>, vector<1x8x32xbf16>,
    return
  }
  func.func @transform_0(%arg0: i32) -> (i32, i32, i32) {
    %c0_i32 = arith.constant 0 : i32
    %c0_i32_0 = arith.constant 0 : i32
    %c0_i32_1 = arith.constant 0 : i32
    return %arg0, %c0_i32, %c0_i32_0 : i32, i32, i32
  }
  func.func @transform_1(%arg0: i32) -> (i32, i32, i32) {
    %c0_i32 = arith.constant 0 : i32
    %c0_i32_0 = arith.constant 0 : i32
    %c0_i32_1 = arith.constant 0 : i32
    return %arg0, %c0_i32, %c0_i32_0 : i32, i32, i32
  }
  func.func @transform_2(%arg0: i32) -> (i32, i32, i32) {
    %c0_i32 = arith.constant 0 : i32
    %c0_i32_0 = arith.constant 0 : i32
    %c0_i32_1 = arith.constant 0 : i32
    return %arg0, %c0_i32, %c0_i32_0 : i32, i32, i32
  }
}

module attributes {stable_mosaic.version = 11 : i64} {
  func.func @_linear_res_ln_kernel(%arg0: i32, %arg1: memref<16x32xbf16, #tpu.memory_space<vmem>>, %arg2: memref<32x32xbf16, #tpu.memory_space<vmem>>, %arg3: memref<1x32xf32, #tpu.memory_space<vmem>>, %arg4: memref<16x32xf32, #tpu.memory_space<vmem>>, %arg5: memref<1x32xf32, #tpu.memory_space<vmem>>, %arg6: memref<1x32xf32, #tpu.memory_space<vmem>>, %arg7: memref<16x32xf32, #tpu.memory_space<vmem>>) attributes {dimension_semantics = [#tpu.dimension_semantics<parallel>], iteration_bounds = array<i64: 1>, scalar_prefetch = 0 : i64, scratch_operands = 0 : i64, tpu.core_type = #tpu.core_type<tc>, window_params = [{transform_indices = @transform_0, window_bounds = array<i64: 16, 32>}, {pipeline_mode = #tpu.pipeline_mode<synchronous>, transform_indices = @transform_1, window_bounds = array<i64: 32, 32>}, {pipeline_mode = #tpu.pipeline_mode<synchronous>, transform_indices = @transform_2, window_bounds = array<i64: 1, 32>}, {transform_indices = @transform_3, window_bounds = array<i64: 16, 32>}, {pipeline_mode = #tpu.pipeline_mode<synchronous>, transform_indices = @transform_4, window_bounds = array<i64: 1, 32>}, {pipeline_mode = #tpu.pipeline_mode<synchronous>, transform_indices = @transform_5, window_bounds = array<i64: 1, 32>}, {transform_indices = @transform_6, window_bounds = array<i64: 16, 32>}]} {
    %c0 = arith.constant 0 : index
    %c0_0 = arith.constant 0 : index
    %0 = vector.load %arg1[%c0, %c0_0] : memref<16x32xbf16, #tpu.memory_space<vmem>>, vector<16x32xbf16>
    %c0_1 = arith.constant 0 : index
    %c0_2 = arith.constant 0 : index
    %1 = vector.load %arg2[%c0_1, %c0_2] : memref<32x32xbf16, #tpu.memory_space<vmem>>, vector<32x32xbf16>
    %cst = arith.constant dense<0.000000e+00> : vector<16x32xf32>
    %2 = tpu.matmul %0, %1, %cst {dimension_numbers = #tpu.dot_dimension_numbers<[1], [0], [0], [1], [0, 0, 1, 1], [], []>} : vector<16x32xbf16>, vector<32x32xbf16>, vector<16x32xf32> -> vector<16x32xf32>
    %c0_3 = arith.constant 0 : index
    %c0_4 = arith.constant 0 : index
    %3 = vector.load %arg3[%c0_3, %c0_4] : memref<1x32xf32, #tpu.memory_space<vmem>>, vector<1x32xf32>
    %4 = vector.broadcast %3 : vector<1x32xf32> to vector<16x32xf32>
    %5 = arith.addf %2, %4 : vector<16x32xf32>
    %c0_5 = arith.constant 0 : index
    %c0_6 = arith.constant 0 : index
    %6 = vector.load %arg4[%c0_5, %c0_6] : memref<16x32xf32, #tpu.memory_space<vmem>>, vector<16x32xf32>
    %7 = arith.addf %5, %6 : vector<16x32xf32>
    %cst_7 = arith.constant dense<0.000000e+00> : vector<16xf32>
    %8 = vector.multi_reduction <add>, %7, %cst_7 [1] : vector<16x32xf32> to vector<16xf32>
    %9 = vector.shape_cast %8 : vector<16xf32> to vector<16x1xf32>
    %cst_8 = arith.constant 3.200000e+01 : f32
    %10 = vector.broadcast %cst_8 : f32 to vector<16x1xf32>
    %11 = arith.divf %9, %10 : vector<16x1xf32>
    %12 = vector.broadcast %11 : vector<16x1xf32> to vector<16x32xf32>
    %13 = arith.subf %7, %12 : vector<16x32xf32>
    %14 = vector.broadcast %11 : vector<16x1xf32> to vector<16x32xf32>
    %15 = arith.subf %7, %14 : vector<16x32xf32>
    %16 = arith.mulf %13, %15 : vector<16x32xf32>
    %cst_9 = arith.constant dense<0.000000e+00> : vector<16xf32>
    %17 = vector.multi_reduction <add>, %16, %cst_9 [1] : vector<16x32xf32> to vector<16xf32>
    %18 = vector.shape_cast %17 : vector<16xf32> to vector<16x1xf32>
    %cst_10 = arith.constant 3.200000e+01 : f32
    %19 = vector.broadcast %cst_10 : f32 to vector<16x1xf32>
    %20 = arith.divf %18, %19 : vector<16x1xf32>
    %21 = vector.broadcast %11 : vector<16x1xf32> to vector<16x32xf32>
    %22 = arith.subf %7, %21 : vector<16x32xf32>
    %cst_11 = arith.constant 9.99999974E-6 : f32
    %23 = vector.broadcast %cst_11 : f32 to vector<16x1xf32>
    %24 = arith.addf %20, %23 : vector<16x1xf32>
    %25 = math.rsqrt %24 : vector<16x1xf32>
    %26 = vector.broadcast %25 : vector<16x1xf32> to vector<16x32xf32>
    %27 = arith.mulf %22, %26 : vector<16x32xf32>
    %c0_12 = arith.constant 0 : index
    %c0_13 = arith.constant 0 : index
    %28 = vector.load %arg5[%c0_12, %c0_13] : memref<1x32xf32, #tpu.memory_space<vmem>>, vector<1x32xf32>
    %29 = vector.broadcast %28 : vector<1x32xf32> to vector<16x32xf32>
    %30 = arith.mulf %27, %29 : vector<16x32xf32>
    %c0_14 = arith.constant 0 : index
    %c0_15 = arith.constant 0 : index
    %31 = vector.load %arg6[%c0_14, %c0_15] : memref<1x32xf32, #tpu.memory_space<vmem>>, vector<1x32xf32>
    %32 = vector.broadcast %31 : vector<1x32xf32> to vector<16x32xf32>
    %33 = arith.addf %30, %32 : vector<16x32xf32>
    %c0_16 = arith.constant 0 : index
    %c0_17 = arith.constant 0 : index
    %34 = vector.load %arg7[%c0_16, %c0_17] : memref<16x32xf32, #tpu.memory_space<vmem>>, vector<16x32xf32>
    tpu.vector_store %arg7[%c0_16, %c0_17], %33 {strides = array<i32>} : memref<16x32xf32, #tpu.memory_space<vmem>>, vector<16x32xf32>,
    return
  }
  func.func @transform_0(%arg0: i32) -> (i32, i32) {
    %c0_i32 = arith.constant 0 : i32
    %c0_i32_0 = arith.constant 0 : i32
    return %arg0, %c0_i32 : i32, i32
  }
  func.func @transform_1(%arg0: i32) -> (i32, i32) {
    %c0_i32 = arith.constant 0 : i32
    %c0_i32_0 = arith.constant 0 : i32
    %c0_i32_1 = arith.constant 0 : i32
    return %c0_i32, %c0_i32_0 : i32, i32
  }
  func.func @transform_2(%arg0: i32) -> (i32, i32) {
    %c0_i32 = arith.constant 0 : i32
    %c0_i32_0 = arith.constant 0 : i32
    %c0_i32_1 = arith.constant 0 : i32
    return %c0_i32, %c0_i32_0 : i32, i32
  }
  func.func @transform_3(%arg0: i32) -> (i32, i32) {
    %c0_i32 = arith.constant 0 : i32
    %c0_i32_0 = arith.constant 0 : i32
    return %arg0, %c0_i32 : i32, i32
  }
  func.func @transform_4(%arg0: i32) -> (i32, i32) {
    %c0_i32 = arith.constant 0 : i32
    %c0_i32_0 = arith.constant 0 : i32
    %c0_i32_1 = arith.constant 0 : i32
    return %c0_i32, %c0_i32_0 : i32, i32
  }
  func.func @transform_5(%arg0: i32) -> (i32, i32) {
    %c0_i32 = arith.constant 0 : i32
    %c0_i32_0 = arith.constant 0 : i32
    %c0_i32_1 = arith.constant 0 : i32
    return %c0_i32, %c0_i32_0 : i32, i32
  }
  func.func @transform_6(%arg0: i32) -> (i32, i32) {
    %c0_i32 = arith.constant 0 : i32
    %c0_i32_0 = arith.constant 0 : i32
    return %arg0, %c0_i32 : i32, i32
  }
}

module attributes {stable_mosaic.version = 11 : i64} {
  func.func @_linear_res_ln_kernel(%arg0: i32, %arg1: memref<16x64xbf16, #tpu.memory_space<vmem>>, %arg2: memref<64x32xbf16, #tpu.memory_space<vmem>>, %arg3: memref<1x32xf32, #tpu.memory_space<vmem>>, %arg4: memref<16x32xf32, #tpu.memory_space<vmem>>, %arg5: memref<1x32xf32, #tpu.memory_space<vmem>>, %arg6: memref<1x32xf32, #tpu.memory_space<vmem>>, %arg7: memref<16x32xf32, #tpu.memory_space<vmem>>) attributes {dimension_semantics = [#tpu.dimension_semantics<parallel>], iteration_bounds = array<i64: 1>, scalar_prefetch = 0 : i64, scratch_operands = 0 : i64, tpu.core_type = #tpu.core_type<tc>, window_params = [{transform_indices = @transform_0, window_bounds = array<i64: 16, 64>}, {pipeline_mode = #tpu.pipeline_mode<synchronous>, transform_indices = @transform_1, window_bounds = array<i64: 64, 32>}, {pipeline_mode = #tpu.pipeline_mode<synchronous>, transform_indices = @transform_2, window_bounds = array<i64: 1, 32>}, {transform_indices = @transform_3, window_bounds = array<i64: 16, 32>}, {pipeline_mode = #tpu.pipeline_mode<synchronous>, transform_indices = @transform_4, window_bounds = array<i64: 1, 32>}, {pipeline_mode = #tpu.pipeline_mode<synchronous>, transform_indices = @transform_5, window_bounds = array<i64: 1, 32>}, {transform_indices = @transform_6, window_bounds = array<i64: 16, 32>}]} {
    %c0 = arith.constant 0 : index
    %c0_0 = arith.constant 0 : index
    %0 = vector.load %arg1[%c0, %c0_0] : memref<16x64xbf16, #tpu.memory_space<vmem>>, vector<16x64xbf16>
    %c0_1 = arith.constant 0 : index
    %c0_2 = arith.constant 0 : index
    %1 = vector.load %arg2[%c0_1, %c0_2] : memref<64x32xbf16, #tpu.memory_space<vmem>>, vector<64x32xbf16>
    %cst = arith.constant dense<0.000000e+00> : vector<16x32xf32>
    %2 = tpu.matmul %0, %1, %cst {dimension_numbers = #tpu.dot_dimension_numbers<[1], [0], [0], [1], [0, 0, 1, 1], [], []>} : vector<16x64xbf16>, vector<64x32xbf16>, vector<16x32xf32> -> vector<16x32xf32>
    %c0_3 = arith.constant 0 : index
    %c0_4 = arith.constant 0 : index
    %3 = vector.load %arg3[%c0_3, %c0_4] : memref<1x32xf32, #tpu.memory_space<vmem>>, vector<1x32xf32>
    %4 = vector.broadcast %3 : vector<1x32xf32> to vector<16x32xf32>
    %5 = arith.addf %2, %4 : vector<16x32xf32>
    %c0_5 = arith.constant 0 : index
    %c0_6 = arith.constant 0 : index
    %6 = vector.load %arg4[%c0_5, %c0_6] : memref<16x32xf32, #tpu.memory_space<vmem>>, vector<16x32xf32>
    %7 = arith.addf %5, %6 : vector<16x32xf32>
    %cst_7 = arith.constant dense<0.000000e+00> : vector<16xf32>
    %8 = vector.multi_reduction <add>, %7, %cst_7 [1] : vector<16x32xf32> to vector<16xf32>
    %9 = vector.shape_cast %8 : vector<16xf32> to vector<16x1xf32>
    %cst_8 = arith.constant 3.200000e+01 : f32
    %10 = vector.broadcast %cst_8 : f32 to vector<16x1xf32>
    %11 = arith.divf %9, %10 : vector<16x1xf32>
    %12 = vector.broadcast %11 : vector<16x1xf32> to vector<16x32xf32>
    %13 = arith.subf %7, %12 : vector<16x32xf32>
    %14 = vector.broadcast %11 : vector<16x1xf32> to vector<16x32xf32>
    %15 = arith.subf %7, %14 : vector<16x32xf32>
    %16 = arith.mulf %13, %15 : vector<16x32xf32>
    %cst_9 = arith.constant dense<0.000000e+00> : vector<16xf32>
    %17 = vector.multi_reduction <add>, %16, %cst_9 [1] : vector<16x32xf32> to vector<16xf32>
    %18 = vector.shape_cast %17 : vector<16xf32> to vector<16x1xf32>
    %cst_10 = arith.constant 3.200000e+01 : f32
    %19 = vector.broadcast %cst_10 : f32 to vector<16x1xf32>
    %20 = arith.divf %18, %19 : vector<16x1xf32>
    %21 = vector.broadcast %11 : vector<16x1xf32> to vector<16x32xf32>
    %22 = arith.subf %7, %21 : vector<16x32xf32>
    %cst_11 = arith.constant 9.99999974E-6 : f32
    %23 = vector.broadcast %cst_11 : f32 to vector<16x1xf32>
    %24 = arith.addf %20, %23 : vector<16x1xf32>
    %25 = math.rsqrt %24 : vector<16x1xf32>
    %26 = vector.broadcast %25 : vector<16x1xf32> to vector<16x32xf32>
    %27 = arith.mulf %22, %26 : vector<16x32xf32>
    %c0_12 = arith.constant 0 : index
    %c0_13 = arith.constant 0 : index
    %28 = vector.load %arg5[%c0_12, %c0_13] : memref<1x32xf32, #tpu.memory_space<vmem>>, vector<1x32xf32>
    %29 = vector.broadcast %28 : vector<1x32xf32> to vector<16x32xf32>
    %30 = arith.mulf %27, %29 : vector<16x32xf32>
    %c0_14 = arith.constant 0 : index
    %c0_15 = arith.constant 0 : index
    %31 = vector.load %arg6[%c0_14, %c0_15] : memref<1x32xf32, #tpu.memory_space<vmem>>, vector<1x32xf32>
    %32 = vector.broadcast %31 : vector<1x32xf32> to vector<16x32xf32>
    %33 = arith.addf %30, %32 : vector<16x32xf32>
    %c0_16 = arith.constant 0 : index
    %c0_17 = arith.constant 0 : index
    %34 = vector.load %arg7[%c0_16, %c0_17] : memref<16x32xf32, #tpu.memory_space<vmem>>, vector<16x32xf32>
    tpu.vector_store %arg7[%c0_16, %c0_17], %33 {strides = array<i32>} : memref<16x32xf32, #tpu.memory_space<vmem>>, vector<16x32xf32>,
    return
  }
  func.func @transform_0(%arg0: i32) -> (i32, i32) {
    %c0_i32 = arith.constant 0 : i32
    %c0_i32_0 = arith.constant 0 : i32
    return %arg0, %c0_i32 : i32, i32
  }
  func.func @transform_1(%arg0: i32) -> (i32, i32) {
    %c0_i32 = arith.constant 0 : i32
    %c0_i32_0 = arith.constant 0 : i32
    %c0_i32_1 = arith.constant 0 : i32
    return %c0_i32, %c0_i32_0 : i32, i32
  }
  func.func @transform_2(%arg0: i32) -> (i32, i32) {
    %c0_i32 = arith.constant 0 : i32
    %c0_i32_0 = arith.constant 0 : i32
    %c0_i32_1 = arith.constant 0 : i32
    return %c0_i32, %c0_i32_0 : i32, i32
  }
  func.func @transform_3(%arg0: i32) -> (i32, i32) {
    %c0_i32 = arith.constant 0 : i32
    %c0_i32_0 = arith.constant 0 : i32
    return %arg0, %c0_i32 : i32, i32
  }
  func.func @transform_4(%arg0: i32) -> (i32, i32) {
    %c0_i32 = arith.constant 0 : i32
    %c0_i32_0 = arith.constant 0 : i32
    %c0_i32_1 = arith.constant 0 : i32
    return %c0_i32, %c0_i32_0 : i32, i32
  }
  func.func @transform_5(%arg0: i32) -> (i32, i32) {
    %c0_i32 = arith.constant 0 : i32
    %c0_i32_0 = arith.constant 0 : i32
    %c0_i32_1 = arith.constant 0 : i32
    return %c0_i32, %c0_i32_0 : i32, i32
  }
  func.func @transform_6(%arg0: i32) -> (i32, i32) {
    %c0_i32 = arith.constant 0 : i32
    %c0_i32_0 = arith.constant 0 : i32
    return %arg0, %c0_i32 : i32, i32
  }
}

module attributes {stable_mosaic.version = 11 : i64} {
  func.func @_vis_cls_kernel(%arg0: i32, %arg1: memref<2x48xf32, #tpu.memory_space<vmem>>, %arg2: memref<48x32xbf16, #tpu.memory_space<vmem>>, %arg3: memref<1x32xf32, #tpu.memory_space<vmem>>, %arg4: memref<2x8x32xf32, #tpu.memory_space<vmem>>, %arg5: memref<32x32xbf16, #tpu.memory_space<vmem>>, %arg6: memref<2x32xf32, #tpu.memory_space<vmem>>, %arg7: memref<32x2xbf16, #tpu.memory_space<vmem>>, %arg8: memref<32x2xbf16, #tpu.memory_space<vmem>>, %arg9: memref<1x2xf32, #tpu.memory_space<vmem>>, %arg10: memref<2x2xf32, #tpu.memory_space<vmem>>) attributes {dimension_semantics = [#tpu.dimension_semantics<parallel>], iteration_bounds = array<i64: 1>, scalar_prefetch = 0 : i64, scratch_operands = 0 : i64, tpu.core_type = #tpu.core_type<tc>, window_params = [{transform_indices = @transform_0, window_bounds = array<i64: 2, 48>}, {pipeline_mode = #tpu.pipeline_mode<synchronous>, transform_indices = @transform_1, window_bounds = array<i64: 48, 32>}, {pipeline_mode = #tpu.pipeline_mode<synchronous>, transform_indices = @transform_2, window_bounds = array<i64: 1, 32>}, {transform_indices = @transform_3, window_bounds = array<i64: 2, 8, 32>}, {pipeline_mode = #tpu.pipeline_mode<synchronous>, transform_indices = @transform_4, window_bounds = array<i64: 32, 32>}, {transform_indices = @transform_5, window_bounds = array<i64: 2, 32>}, {pipeline_mode = #tpu.pipeline_mode<synchronous>, transform_indices = @transform_6, window_bounds = array<i64: 32, 2>}, {pipeline_mode = #tpu.pipeline_mode<synchronous>, transform_indices = @transform_7, window_bounds = array<i64: 32, 2>}, {pipeline_mode = #tpu.pipeline_mode<synchronous>, transform_indices = @transform_8, window_bounds = array<i64: 1, 2>}, {transform_indices = @transform_9, window_bounds = array<i64: 2, 2>}]} {
    %c0 = arith.constant 0 : index
    %c0_0 = arith.constant 0 : index
    %0 = vector.load %arg1[%c0, %c0_0] : memref<2x48xf32, #tpu.memory_space<vmem>>, vector<2x48xf32>
    %1 = arith.truncf %0 : vector<2x48xf32> to vector<2x48xbf16>
    %c0_1 = arith.constant 0 : index
    %c0_2 = arith.constant 0 : index
    %2 = vector.load %arg2[%c0_1, %c0_2] : memref<48x32xbf16, #tpu.memory_space<vmem>>, vector<48x32xbf16>
    %cst = arith.constant dense<0.000000e+00> : vector<2x32xf32>
    %3 = tpu.matmul %1, %2, %cst {dimension_numbers = #tpu.dot_dimension_numbers<[1], [0], [0], [1], [0, 0, 1, 1], [], []>} : vector<2x48xbf16>, vector<48x32xbf16>, vector<2x32xf32> -> vector<2x32xf32>
    %c0_3 = arith.constant 0 : index
    %c0_4 = arith.constant 0 : index
    %4 = vector.load %arg3[%c0_3, %c0_4] : memref<1x32xf32, #tpu.memory_space<vmem>>, vector<1x32xf32>
    %5 = vector.broadcast %4 : vector<1x32xf32> to vector<2x32xf32>
    %6 = arith.addf %3, %5 : vector<2x32xf32>
    %7 = arith.truncf %6 : vector<2x32xf32> to vector<2x32xbf16>
    %c0_5 = arith.constant 0 : index
    %c0_6 = arith.constant 0 : index
    %8 = vector.load %arg5[%c0_5, %c0_6] : memref<32x32xbf16, #tpu.memory_space<vmem>>, vector<32x32xbf16>
    %cst_7 = arith.constant dense<0.000000e+00> : vector<2x32xf32>
    %9 = tpu.matmul %7, %8, %cst_7 {dimension_numbers = #tpu.dot_dimension_numbers<[1], [0], [0], [1], [0, 0, 1, 1], [], []>} : vector<2x32xbf16>, vector<32x32xbf16>, vector<2x32xf32> -> vector<2x32xf32>
    %10 = vector.shape_cast %9 : vector<2x32xf32> to vector<2x1x32xf32>
    %c0_8 = arith.constant 0 : index
    %c0_9 = arith.constant 0 : index
    %c0_10 = arith.constant 0 : index
    %11 = vector.load %arg4[%c0_8, %c0_9, %c0_10] : memref<2x8x32xf32, #tpu.memory_space<vmem>>, vector<2x8x32xf32>
    %12 = arith.truncf %11 : vector<2x8x32xf32> to vector<2x8x32xbf16>
    %13 = arith.truncf %10 : vector<2x1x32xf32> to vector<2x1x32xbf16>
    "tpu.trace_start"() <{level = 10 : i32, message = "bqh,bsh->bqs"}> : () -> ()
    %cst_11 = arith.constant dense<0.000000e+00> : vector<2x1x8xf32>
    %14 = tpu.matmul %13, %12, %cst_11 {dimension_numbers = #tpu.dot_dimension_numbers<[2], [2], [1], [1], [0, 0, 0, 1, 1, 1], [0], [0]>} : vector<2x1x32xbf16>, vector<2x8x32xbf16>, vector<2x1x8xf32> -> vector<2x1x8xf32>
    "tpu.trace_stop"() : () -> ()
    %cst_12 = arith.constant 0.176776692 : f32
    %15 = vector.broadcast %cst_12 : f32 to vector<2x1x8xf32>
    %16 = arith.mulf %14, %15 : vector<2x1x8xf32>
    %cst_13 = arith.constant dense<0xFF800000> : vector<2x1xf32>
    %17 = vector.multi_reduction <maximumf>, %16, %cst_13 [2] : vector<2x1x8xf32> to vector<2x1xf32>
    %18 = vector.shape_cast %17 : vector<2x1xf32> to vector<2x1x1xf32>
    %19 = vector.broadcast %18 : vector<2x1x1xf32> to vector<2x1x8xf32>
    %20 = arith.subf %16, %19 : vector<2x1x8xf32>
    %21 = math.exp %20 : vector<2x1x8xf32>
    %cst_14 = arith.constant dense<0.000000e+00> : vector<2x1xf32>
    %22 = vector.multi_reduction <add>, %21, %cst_14 [2] : vector<2x1x8xf32> to vector<2x1xf32>
    %23 = vector.shape_cast %22 : vector<2x1xf32> to vector<2x1x1xf32>
    %24 = tpu.reciprocal %23 {approx = true} : vector<2x1x1xf32> -> vector<2x1x1xf32>
    %25 = vector.broadcast %24 : vector<2x1x1xf32> to vector<2x1x8xf32>
    %26 = arith.mulf %21, %25 : vector<2x1x8xf32>
    %27 = arith.truncf %26 : vector<2x1x8xf32> to vector<2x1x8xbf16>
    "tpu.trace_start"() <{level = 10 : i32, message = "bqs,bsh->bqh"}> : () -> ()
    %cst_15 = arith.constant dense<0.000000e+00> : vector<2x1x32xf32>
    %28 = tpu.matmul %27, %12, %cst_15 {dimension_numbers = #tpu.dot_dimension_numbers<[2], [1], [1], [2], [0, 0, 0, 1, 1, 2], [0], [0]>} : vector<2x1x8xbf16>, vector<2x8x32xbf16>, vector<2x1x32xf32> -> vector<2x1x32xf32>
    "tpu.trace_stop"() : () -> ()
    %29 = vector.shape_cast %28 : vector<2x1x32xf32> to vector<2x32xf32>
    %30 = arith.truncf %29 : vector<2x32xf32> to vector<2x32xbf16>
    %c0_16 = arith.constant 0 : index
    %c0_17 = arith.constant 0 : index
    %31 = vector.load %arg7[%c0_16, %c0_17] : memref<32x2xbf16, #tpu.memory_space<vmem>>, vector<32x2xbf16>
    %cst_18 = arith.constant dense<0.000000e+00> : vector<2x2xf32>
    %32 = tpu.matmul %30, %31, %cst_18 {dimension_numbers = #tpu.dot_dimension_numbers<[1], [0], [0], [1], [0, 0, 1, 1], [], []>} : vector<2x32xbf16>, vector<32x2xbf16>, vector<2x2xf32> -> vector<2x2xf32>
    %c0_19 = arith.constant 0 : index
    %c0_20 = arith.constant 0 : index
    %33 = vector.load %arg6[%c0_19, %c0_20] : memref<2x32xf32, #tpu.memory_space<vmem>>, vector<2x32xf32>
    %34 = arith.truncf %33 : vector<2x32xf32> to vector<2x32xbf16>
    %c0_21 = arith.constant 0 : index
    %c0_22 = arith.constant 0 : index
    %35 = vector.load %arg8[%c0_21, %c0_22] : memref<32x2xbf16, #tpu.memory_space<vmem>>, vector<32x2xbf16>
    %cst_23 = arith.constant dense<0.000000e+00> : vector<2x2xf32>
    %36 = tpu.matmul %34, %35, %cst_23 {dimension_numbers = #tpu.dot_dimension_numbers<[1], [0], [0], [1], [0, 0, 1, 1], [], []>} : vector<2x32xbf16>, vector<32x2xbf16>, vector<2x2xf32> -> vector<2x2xf32>
    %37 = arith.addf %32, %36 : vector<2x2xf32>
    %c0_24 = arith.constant 0 : index
    %c0_25 = arith.constant 0 : index
    %38 = vector.load %arg9[%c0_24, %c0_25] : memref<1x2xf32, #tpu.memory_space<vmem>>, vector<1x2xf32>
    %39 = vector.broadcast %38 : vector<1x2xf32> to vector<2x2xf32>
    %40 = arith.addf %37, %39 : vector<2x2xf32>
    %c0_26 = arith.constant 0 : index
    %c0_27 = arith.constant 0 : index
    %41 = vector.load %arg10[%c0_26, %c0_27] : memref<2x2xf32, #tpu.memory_space<vmem>>, vector<2x2xf32>
    tpu.vector_store %arg10[%c0_26, %c0_27], %40 {strides = array<i32>} : memref<2x2xf32, #tpu.memory_space<vmem>>, vector<2x2xf32>,
    return
  }
  func.func @transform_0(%arg0: i32) -> (i32, i32) {
    %c0_i32 = arith.constant 0 : i32
    %c0_i32_0 = arith.constant 0 : i32
    return %arg0, %c0_i32 : i32, i32
  }
  func.func @transform_1(%arg0: i32) -> (i32, i32) {
    %c0_i32 = arith.constant 0 : i32
    %c0_i32_0 = arith.constant 0 : i32
    %c0_i32_1 = arith.constant 0 : i32
    return %c0_i32, %c0_i32_0 : i32, i32
  }
  func.func @transform_2(%arg0: i32) -> (i32, i32) {
    %c0_i32 = arith.constant 0 : i32
    %c0_i32_0 = arith.constant 0 : i32
    %c0_i32_1 = arith.constant 0 : i32
    return %c0_i32, %c0_i32_0 : i32, i32
  }
  func.func @transform_3(%arg0: i32) -> (i32, i32, i32) {
    %c0_i32 = arith.constant 0 : i32
    %c0_i32_0 = arith.constant 0 : i32
    %c0_i32_1 = arith.constant 0 : i32
    return %arg0, %c0_i32, %c0_i32_0 : i32, i32, i32
  }
  func.func @transform_4(%arg0: i32) -> (i32, i32) {
    %c0_i32 = arith.constant 0 : i32
    %c0_i32_0 = arith.constant 0 : i32
    %c0_i32_1 = arith.constant 0 : i32
    return %c0_i32, %c0_i32_0 : i32, i32
  }
  func.func @transform_5(%arg0: i32) -> (i32, i32) {
    %c0_i32 = arith.constant 0 : i32
    %c0_i32_0 = arith.constant 0 : i32
    return %arg0, %c0_i32 : i32, i32
  }
  func.func @transform_6(%arg0: i32) -> (i32, i32) {
    %c0_i32 = arith.constant 0 : i32
    %c0_i32_0 = arith.constant 0 : i32
    %c0_i32_1 = arith.constant 0 : i32
    return %c0_i32, %c0_i32_0 : i32, i32
  }
  func.func @transform_7(%arg0: i32) -> (i32, i32) {
    %c0_i32 = arith.constant 0 : i32
    %c0_i32_0 = arith.constant 0 : i32
    %c0_i32_1 = arith.constant 0 : i32
    return %c0_i32, %c0_i32_0 : i32, i32
  }
  func.func @transform_8(%arg0: i32) -> (i32, i32) {
    %c0_i32 = arith.constant 0 : i32
    %c0_i32_0 = arith.constant 0 : i32
    %c0_i32_1 = arith.constant 0 : i32
    return %c0_i32, %c0_i32_0 : i32, i32
  }
  func.func @transform_9(%arg0: i32) -> (i32, i32) {
    %c0_i32 = arith.constant 0 : i32
    %c0_i32_0 = arith.constant 0 : i32
    return %arg0, %c0_i32 : i32, i32
  }
}

module attributes {stable_mosaic.version = 11 : i64} {
  func.func @_linear_kernel(%arg0: i32, %arg1: i32, %arg2: memref<16x32xf32, #tpu.memory_space<vmem>>, %arg3: memref<32x64xbf16, #tpu.memory_space<vmem>>, %arg4: memref<1x64xf32, #tpu.memory_space<vmem>>, %arg5: memref<16x64xbf16, #tpu.memory_space<vmem>>) attributes {dimension_semantics = [#tpu.dimension_semantics<parallel>, #tpu.dimension_semantics<parallel>], iteration_bounds = array<i64: 1, 1>, scalar_prefetch = 0 : i64, scratch_operands = 0 : i64, tpu.core_type = #tpu.core_type<tc>, window_params = [{transform_indices = @transform_0, window_bounds = array<i64: 16, 32>}, {transform_indices = @transform_1, window_bounds = array<i64: 32, 64>}, {transform_indices = @transform_2, window_bounds = array<i64: 1, 64>}, {transform_indices = @transform_3, window_bounds = array<i64: 16, 64>}]} {
    %c0 = arith.constant 0 : index
    %c0_0 = arith.constant 0 : index
    %0 = vector.load %arg2[%c0, %c0_0] : memref<16x32xf32, #tpu.memory_space<vmem>>, vector<16x32xf32>
    %1 = arith.truncf %0 : vector<16x32xf32> to vector<16x32xbf16>
    %c0_1 = arith.constant 0 : index
    %c0_2 = arith.constant 0 : index
    %2 = vector.load %arg3[%c0_1, %c0_2] : memref<32x64xbf16, #tpu.memory_space<vmem>>, vector<32x64xbf16>
    %cst = arith.constant dense<0.000000e+00> : vector<16x64xf32>
    %3 = tpu.matmul %1, %2, %cst {dimension_numbers = #tpu.dot_dimension_numbers<[1], [0], [0], [1], [0, 0, 1, 1], [], []>} : vector<16x32xbf16>, vector<32x64xbf16>, vector<16x64xf32> -> vector<16x64xf32>
    %c0_3 = arith.constant 0 : index
    %c0_4 = arith.constant 0 : index
    %4 = vector.load %arg4[%c0_3, %c0_4] : memref<1x64xf32, #tpu.memory_space<vmem>>, vector<1x64xf32>
    %5 = vector.broadcast %4 : vector<1x64xf32> to vector<16x64xf32>
    %6 = arith.addf %3, %5 : vector<16x64xf32>
    %7 = arith.mulf %6, %6 : vector<16x64xf32>
    %8 = arith.mulf %6, %7 : vector<16x64xf32>
    %cst_5 = arith.constant 4.471500e-02 : f32
    %9 = vector.broadcast %cst_5 : f32 to vector<16x64xf32>
    %10 = arith.mulf %9, %8 : vector<16x64xf32>
    %11 = arith.addf %6, %10 : vector<16x64xf32>
    %cst_6 = arith.constant 0.797884583 : f32
    %12 = vector.broadcast %cst_6 : f32 to vector<16x64xf32>
    %13 = arith.mulf %12, %11 : vector<16x64xf32>
    %14 = math.tanh %13 : vector<16x64xf32>
    %cst_7 = arith.constant 1.000000e+00 : f32
    %15 = vector.broadcast %cst_7 : f32 to vector<16x64xf32>
    %16 = arith.addf %15, %14 : vector<16x64xf32>
    %cst_8 = arith.constant 5.000000e-01 : f32
    %17 = vector.broadcast %cst_8 : f32 to vector<16x64xf32>
    %18 = arith.mulf %17, %16 : vector<16x64xf32>
    %19 = arith.mulf %6, %18 : vector<16x64xf32>
    %20 = arith.truncf %19 : vector<16x64xf32> to vector<16x64xbf16>
    %c0_9 = arith.constant 0 : index
    %c0_10 = arith.constant 0 : index
    %21 = vector.load %arg5[%c0_9, %c0_10] : memref<16x64xbf16, #tpu.memory_space<vmem>>, vector<16x64xbf16>
    tpu.vector_store %arg5[%c0_9, %c0_10], %20 {strides = array<i32>} : memref<16x64xbf16, #tpu.memory_space<vmem>>, vector<16x64xbf16>,
    return
  }
  func.func @transform_0(%arg0: i32, %arg1: i32) -> (i32, i32) {
    %c0_i32 = arith.constant 0 : i32
    %c0_i32_0 = arith.constant 0 : i32
    return %arg0, %c0_i32 : i32, i32
  }
  func.func @transform_1(%arg0: i32, %arg1: i32) -> (i32, i32) {
    %c0_i32 = arith.constant 0 : i32
    %c0_i32_0 = arith.constant 0 : i32
    return %c0_i32, %arg1 : i32, i32
  }
  func.func @transform_2(%arg0: i32, %arg1: i32) -> (i32, i32) {
    %c0_i32 = arith.constant 0 : i32
    %c0_i32_0 = arith.constant 0 : i32
    return %c0_i32, %arg1 : i32, i32
  }
  func.func @transform_3(%arg0: i32, %arg1: i32) -> (i32, i32) {
    %c0_i32 = arith.constant 0 : i32
    return %arg0, %arg1 : i32, i32
  }
}

</mosaic_0001>

<llo_original>
// kernel: roberta_base_model_forward.13
$region0: #{roberta_base_model_forward.13}
  #allocation0 [shape = 'u32[]', space=smem, size = 0x4, offset = 0x4, fixed_abs, tag = 'smem constant byte address 0x4 - core index']
  #allocation1 [shape = 'u32[144,128]{1,0:T(1,128)}', space=vmem, size = 0x12000, scoped, tag = 'internal scratch']
  %s0 = inlined_call_operand.vmem [shape: f32[16,32], index: 0, kind: input, shape index: {}]
  %s1 = inlined_call_operand.vmem [shape: bf16[32,96], index: 1, kind: input, shape index: {}]
  %s2 = inlined_call_operand.vmem [shape: f32[1,96], index: 2, kind: input, shape index: {}]
  %s3 = inlined_call_operand.vmem [shape: bf16[16,96], index: 3, kind: output, shape index: {}]
  %s4 = sld [smem:[#allocation0]]
  $region22: #{roberta_base_model_forward.13} parent=0
    _
  %s6 = ssub.s32 1, %s4
  %s7 = scalar_select 0, %s6, %s4
  // Predicated region
  $region2: #{roberta_base_model_forward.13} parent=0 // pred_check
    _
  $region3: #{roberta_base_model_forward.13} parent=0 // pred_check_branch
    %9 = sbr.rel (0) target = $region5
  $region4: #{roberta_base_model_forward.13} parent=0 // pred_region
    _
  $region5: #{roberta_base_model_forward.13} parent=0 // pred_fallthru
    _
  // Predicated region
  $region6: #{roberta_base_model_forward.13} parent=0 // pred_check
    _
  $region7: #{roberta_base_model_forward.13} parent=0 // pred_check_branch
    %11 = sbr.rel (0) target = $region9
  $region8: #{roberta_base_model_forward.13} parent=0 // pred_region
    _
  $region9: #{roberta_base_model_forward.13} parent=0 // pred_fallthru
    _
  // Predicated region
  $region10: #{roberta_base_model_forward.13} parent=0 // pred_check
    _
  $region11: #{roberta_base_model_forward.13} parent=0 // pred_check_branch
    %13 = sbr.rel (0) target = $region13
  $region12: #{roberta_base_model_forward.13} parent=0 // pred_region
    _
  $region13: #{roberta_base_model_forward.13} parent=0 // pred_fallthru
    _
  %v15 = vld [vmem:[%s0] sm:$0xff]
  %v16 = vld [vmem:[%s0 + $0x8] sm:$0xff]
  %v17 = vpack.c.bf16 %v16, %v15
  %v18 = vld [vmem:[%s1] sm:$0xf]
  %v19 = vld [vmem:[%s1 + $0x4] sm:$0xf]
  %v20 = vld [vmem:[%s1 + $0x8] sm:$0xf]
  %v21 = vld [vmem:[%s1 + $0xc] sm:$0xf]
  %v22 = vld [vmem:[%s2] sm:$0x1]
  %v24 = vlaneseq
  %v25 = vshrl.u32 %v24, 7
  %v26 = vsub.s32 0, %v25
  %v27 = vrot.slane %v22, %v26
  %v33 = vunpack.c.l.b16 %v18
  %v34 = vunpack.c.l.b16 %v19
  %v35 = vunpack.c.l.b16 %v20
  %v36 = vunpack.c.l.b16 %v21
  %v37 = vpack.c.b16 %v34, %v33
  %v38 = vpack.c.b16 %v36, %v35
  %vm41 = vcmask 261120
  %v43 = vsel %vm41, %v17, 0
  %45 = vmatprep.subr.bf16.mxu0 0
  %46 = vmatpush1.bf16.msra.mxu0 %v37
  %47 = vmatprep.subr.bf16.mxu0 0
  %48 = vmatpush1.bf16.msra.mxu0 %v38
  %49 = vmatprep.subr.bf16.mxu0 0
  %50 = vmatpush1.bf16.msra.mxu0 0
  %51 = vmatprep.subr.bf16.mxu0 0
  %52 = vmatpush1.bf16.msra.mxu0 0
  %53 = vmatprep.subr.bf16.mxu0 0
  %54 = vmatpush1.bf16.msra.mxu0 0
  %55 = vmatprep.subr.bf16.mxu0 0
  %56 = vmatpush1.bf16.msra.mxu0 0
  %57 = vmatprep.subr.bf16.mxu0 0
  %58 = vmatpush1.bf16.msra.mxu0 0
  %59 = vmatprep.subr.bf16.mxu0 0
  %60 = vmatpush1.bf16.msra.mxu0 0
  %61 = vmatprep.subr.bf16.mxu0 0
  %62 = vmatpush1.bf16.msra.mxu0 0
  %63 = vmatprep.subr.bf16.mxu0 0
  %64 = vmatpush1.bf16.msra.mxu0 0
  %65 = vmatprep.subr.bf16.mxu0 0
  %66 = vmatpush1.bf16.msra.mxu0 0
  %67 = vmatprep.subr.bf16.mxu0 0
  %68 = vmatpush1.bf16.msra.mxu0 0
  %69 = vmatprep.subr.bf16.mxu0 0
  %70 = vmatpush1.bf16.msra.mxu0 0
  %71 = vmatprep.subr.bf16.mxu0 0
  %72 = vmatpush1.bf16.msra.mxu0 0
  %73 = vmatprep.subr.bf16.mxu0 0
  %74 = vmatpush1.bf16.msra.mxu0 0
  %75 = vmatprep.subr.bf16.mxu0 0
  %76 = vmatpush1.bf16.msra.mxu0 0
  %77 = vmatprep.mubr.bf16.mxu0 0
  %78 = vmatmul.mubr.bf16.gmra.mrb[0].mxu0 %v43
  %v79 = vpop.f32.mrb[0].mxu0
  %v80 = vadd.f32 %v27, %v79
  %v81 = vpop.f32.mrb[0].mxu0
  %v82 = vpop.f32.mrb[0].mxu0
  %v83 = vadd.f32 %v27, %v82
  %v84 = vpop.f32.mrb[0].mxu0
  %85 = vdwg.mxu0
  %v86 = vpack.c.bf16 %v83, %v80
  %v88 = vunpack.c.l.b16 %v86
  %v89 = vunpack.c.h.b16 %v86
  %v90 = vpack.c.b16 %v88, %v88
  %v91 = vpack.c.b16 %v89, %v89
  %vm94 = vcmask 781312
  %95 = vst.msk [vmem:[%s3] sm:$0xf] %vm94, %v90
  %96 = vst.msk [vmem:[%s3 + $0x4] sm:$0xf] %vm94, %v91
  // Predicated region
  $region14: #{roberta_base_model_forward.13} parent=0 // pred_check
    _
  $region15: #{roberta_base_model_forward.13} parent=0 // pred_check_branch
    %98 = sbr.rel (0) target = $region17
  $region16: #{roberta_base_model_forward.13} parent=0 // pred_region
    _
  $region17: #{roberta_base_model_forward.13} parent=0 // pred_fallthru
    _
  // Predicated region
  $region18: #{roberta_base_model_forward.13} parent=0 // pred_check
    _
  $region19: #{roberta_base_model_forward.13} parent=0 // pred_check_branch
    %100 = sbr.rel (0) target = $region21
  $region20: #{roberta_base_model_forward.13} parent=0 // pred_region
    _
  $region21: #{roberta_base_model_forward.13} parent=0 // pred_fallthru
    _

// kernel: roberta_base_model_forward.12
$region0: #{roberta_base_model_forward.12}
  #allocation0 [shape = 'u32[]', space=smem, size = 0x4, offset = 0x4, fixed_abs, tag = 'smem constant byte address 0x4 - core index']
  #allocation1 [shape = 'u32[144,128]{1,0:T(1,128)}', space=vmem, size = 0x12000, scoped, tag = 'internal scratch']
  %s0 = inlined_call_operand.vmem [shape: f32[16,32], index: 0, kind: input, shape index: {}]
  %s1 = inlined_call_operand.vmem [shape: f32[1,32], index: 1, kind: input, shape index: {}]
  %s2 = inlined_call_operand.vmem [shape: f32[1,32], index: 2, kind: input, shape index: {}]
  %s3 = inlined_call_operand.vmem [shape: f32[16,32], index: 3, kind: output, shape index: {}]
  %s4 = sld [smem:[#allocation0]]
  $region22: #{roberta_base_model_forward.12} parent=0
    _
  %s6 = ssub.s32 1, %s4
  %s7 = scalar_select 0, %s6, %s4
  // Predicated region
  $region2: #{roberta_base_model_forward.12} parent=0 // pred_check
    _
  $region3: #{roberta_base_model_forward.12} parent=0 // pred_check_branch
    %9 = sbr.rel (0) target = $region5
  $region4: #{roberta_base_model_forward.12} parent=0 // pred_region
    _
  $region5: #{roberta_base_model_forward.12} parent=0 // pred_fallthru
    _
  // Predicated region
  $region6: #{roberta_base_model_forward.12} parent=0 // pred_check
    _
  $region7: #{roberta_base_model_forward.12} parent=0 // pred_check_branch
    %11 = sbr.rel (0) target = $region9
  $region8: #{roberta_base_model_forward.12} parent=0 // pred_region
    _
  $region9: #{roberta_base_model_forward.12} parent=0 // pred_fallthru
    _
  // Predicated region
  $region10: #{roberta_base_model_forward.12} parent=0 // pred_check
    _
  $region11: #{roberta_base_model_forward.12} parent=0 // pred_check_branch
    %13 = sbr.rel (0) target = $region13
  $region12: #{roberta_base_model_forward.12} parent=0 // pred_region
    _
  $region13: #{roberta_base_model_forward.12} parent=0 // pred_fallthru
    _
  %v14 = vld [vmem:[%s0] sm:$0xff]
  %v15 = vld [vmem:[%s0 + $0x8] sm:$0xff]
  %vm16 = vcmask 261120
  %v17 = vsel %vm16, %v14, 0.0
  %18 = vadd.xlane.f32.xlu0 %v17
  %v19 = vpop.xlane.xlu0 %18
  %v20 = vsel %vm16, %v15, 0.0
  %21 = vadd.xlane.f32.xlu0 %v20
  %v22 = vpop.xlane.xlu0 %21
  %v23 = vrcp.pop 32.0
  %v24 = vmul.f32 %v19, %v23
  %v25 = vmul.f32 %v22, %v23
  %v26 = vsub.f32 %v14, %v24
  %v27 = vsub.f32 %v15, %v25
  %v28 = vmul.f32 %v26, %v26
  %v29 = vmul.f32 %v27, %v27
  %v30 = vsel %vm16, %v28, 0.0
  %31 = vadd.xlane.f32.xlu0 %v30
  %v32 = vpop.xlane.xlu0 %31
  %v33 = vsel %vm16, %v29, 0.0
  %34 = vadd.xlane.f32.xlu0 %v33
  %v35 = vpop.xlane.xlu0 %34
  %v36 = vmul.f32 %v32, %v23
  %v37 = vmul.f32 %v35, %v23
  %v38 = vadd.f32 %v36, 1e-05
  %v39 = vadd.f32 %v37, 1e-05
  %v40 = vrsqrt.pop %v38
  %v41 = vrsqrt.pop %v39
  %v42 = vmul.f32 %v26, %v40
  %v43 = vmul.f32 %v27, %v41
  %v44 = vld [vmem:[%s1] sm:$0x1]
  %v46 = vlaneseq
  %v47 = vshrl.u32 %v46, 7
  %v48 = vsub.s32 0, %v47
  %v49 = vrot.slane %v44, %v48
  %v51 = vmul.f32 %v42, %v49
  %v52 = vmul.f32 %v43, %v49
  %v53 = vld [vmem:[%s2] sm:$0x1]
  %v55 = vlaneseq
  %v56 = vshrl.u32 %v55, 7
  %v57 = vsub.s32 0, %v56
  %v58 = vrot.slane %v53, %v57
  %v60 = vadd.f32 %v51, %v58
  %v61 = vadd.f32 %v52, %v58
  %62 = vst.msk [vmem:[%s3] sm:$0xff] %vm16, %v60
  %63 = vst.msk [vmem:[%s3 + $0x8] sm:$0xff] %vm16, %v61
  // Predicated region
  $region14: #{roberta_base_model_forward.12} parent=0 // pred_check
    _
  $region15: #{roberta_base_model_forward.12} parent=0 // pred_check_branch
    %65 = sbr.rel (0) target = $region17
  $region16: #{roberta_base_model_forward.12} parent=0 // pred_region
    _
  $region17: #{roberta_base_model_forward.12} parent=0 // pred_fallthru
    _
  // Predicated region
  $region18: #{roberta_base_model_forward.12} parent=0 // pred_check
    _
  $region19: #{roberta_base_model_forward.12} parent=0 // pred_check_branch
    %67 = sbr.rel (0) target = $region21
  $region20: #{roberta_base_model_forward.12} parent=0 // pred_region
    _
  $region21: #{roberta_base_model_forward.12} parent=0 // pred_fallthru
    _

// kernel: roberta_base_model_forward.14
$region0: #{roberta_base_model_forward.14}
  #allocation0 [shape = 'u32[]', space=smem, size = 0x4, offset = 0x4, fixed_abs, tag = 'smem constant byte address 0x4 - core index']
  #allocation1 [shape = 'u32[144,128]{1,0:T(1,128)}', space=vmem, size = 0x12000, scoped, tag = 'internal scratch']
  %s0 = inlined_call_operand.vmem [shape: bf16[2,8,96], index: 0, kind: input, shape index: {}]
  %s1 = inlined_call_operand.vmem [shape: f32[2,1,8], index: 1, kind: input, shape index: {}]
  %s2 = inlined_call_operand.vmem [shape: bf16[2,8,32], index: 2, kind: output, shape index: {}]
  %s3 = sld [smem:[#allocation0]]
  $region41: #{roberta_base_model_forward.14} parent=0
    _
  %s5 = ssub.s32 1, %s3
  %s6 = scalar_select 0, %s5, %s3
  loop: start=0, step=1, limit=4
  $region2: #{roberta_base_model_forward.14} parent=0 // loop_pre_header
    _
  $region3: #{roberta_base_model_forward.14} parent=0 // loop_header
    %s8 = sphi 0, %s12
    %p9 = scmp.ge.s32.totalorder %s8, 4
    %s18 = sphi 0, %s20
    %s21 = sphi 0, %s18
    %s22 = sphi 0, %s21
    %s38 = sphi 0, %s22
    %s44 = sphi 0, %s46
    %s47 = sphi 0, %s44
    %s48 = sphi 0, %s47
    %s64 = sphi 0, %s48
    %s70 = sphi 0, %s72
    %s73 = sphi 0, %s70
    %s74 = sphi 0, %s73
    %s90 = sphi 0, %s74
  $region4: #{roberta_base_model_forward.14} parent=0 // loop_header_branch
    %11 = sbr.rel (%p9) target = $region8
  $region5: #{roberta_base_model_forward.14} parent=0 // loop_body
    %s13 = ssub.s32 %s8, 1
    %s14 = ssub.s32 %s8, 2
    %s15 = sadd.s32 %s8, 1
    %s16 = ssub.s32 %s8, %s15
    %p17 = scmp.eq.s32.totalorder %s16, 0
    %s19 = sadd.s32 %s18, 1
    %s20 = scalar_select %p17, %s18, %s19
    %p23 = pneg %p17
    %p24 = scmp.eq.s32.totalorder %s8, 1
    %p25 = por %p23, %p24
    %p26 = scmp.ne.s32.totalorder %s18, %s21
    %p27 = scmp.eq.s32.totalorder %s8, 0
    %p28 = por %p26, %p27
    %p29 = scmp.ne.s32.totalorder %s18, %s21
    %p30 = scmp.eq.s32.totalorder %s13, 1
    %p31 = por %p29, %p30
    %p32 = scmp.ne.s32.totalorder %s21, %s22
    %p33 = scmp.eq.s32.totalorder %s13, 0
    %p34 = por %p32, %p33
    %p35 = scmp.ne.s32.totalorder %s21, %s22
    %p36 = scmp.eq.s32.totalorder %s14, 1
    %p37 = por %p35, %p36
    %p39 = scmp.ne.s32.totalorder %s22, %s38
    %p40 = scmp.eq.s32.totalorder %s14, 0
    %p41 = por %p39, %p40
    %s42 = ssub.s32 %s8, %s15
    %p43 = scmp.eq.s32.totalorder %s42, 0
    %s45 = sadd.s32 %s44, 1
    %s46 = scalar_select %p43, %s44, %s45
    %p49 = pneg %p43
    %p50 = scmp.eq.s32.totalorder %s8, 1
    %p51 = por %p49, %p50
    %p52 = scmp.ne.s32.totalorder %s44, %s47
    %p53 = scmp.eq.s32.totalorder %s8, 0
    %p54 = por %p52, %p53
    %p55 = scmp.ne.s32.totalorder %s44, %s47
    %p56 = scmp.eq.s32.totalorder %s13, 1
    %p57 = por %p55, %p56
    %p58 = scmp.ne.s32.totalorder %s47, %s48
    %p59 = scmp.eq.s32.totalorder %s13, 0
    %p60 = por %p58, %p59
    %p61 = scmp.ne.s32.totalorder %s47, %s48
    %p62 = scmp.eq.s32.totalorder %s14, 1
    %p63 = por %p61, %p62
    %p65 = scmp.ne.s32.totalorder %s48, %s64
    %p66 = scmp.eq.s32.totalorder %s14, 0
    %p67 = por %p65, %p66
    %s68 = ssub.s32 %s8, %s15
    %p69 = scmp.eq.s32.totalorder %s68, 0
    %s71 = sadd.s32 %s70, 1
    %s72 = scalar_select %p69, %s70, %s71
    %p75 = pneg %p69
    %p76 = scmp.eq.s32.totalorder %s8, 1
    %p77 = por %p75, %p76
    %p78 = scmp.ne.s32.totalorder %s70, %s73
    %p79 = scmp.eq.s32.totalorder %s8, 0
    %p80 = por %p78, %p79
    %p81 = scmp.ne.s32.totalorder %s70, %s73
    %p82 = scmp.eq.s32.totalorder %s13, 1
    %p83 = por %p81, %p82
    %p84 = scmp.ne.s32.totalorder %s73, %s74
    %p85 = scmp.eq.s32.totalorder %s13, 0
    %p86 = por %p84, %p85
    %p87 = scmp.ne.s32.totalorder %s73, %s74
    %p88 = scmp.eq.s32.totalorder %s14, 1
    %p89 = por %p87, %p88
    %p91 = scmp.ne.s32.totalorder %s74, %s90
    %p92 = scmp.eq.s32.totalorder %s14, 0
    %p93 = por %p91, %p92
    %p94 = scmp.le.s32.totalorder 1, %s8
    %p95 = scmp.lt.s32.totalorder %s8, 3
    %p96 = pnand %p94, %p95
    %p97 = pneg %p96
    // Predicated region
    $region9: #{roberta_base_model_forward.14} parent=5 // pred_check
      _
    $region10: #{roberta_base_model_forward.14} parent=5 // pred_check_branch
      %99 = sbr.rel (%p96) target = $region12
    $region11: #{roberta_base_model_forward.14} parent=5 // pred_region
      %s100 = ssub.s32 %s8, 1
    $region12: #{roberta_base_model_forward.14} parent=5 // pred_fallthru
      _
    %p101 = scmp.lt.s32.totalorder %s8, 2
    // Predicated region
    $region13: #{roberta_base_model_forward.14} parent=5 // pred_check
      %p102 = pneg %p101
    $region14: #{roberta_base_model_forward.14} parent=5 // pred_check_branch
      %104 = sbr.rel (%p102) target = $region16
    $region15: #{roberta_base_model_forward.14} parent=5 // pred_region
      // Predicated region
      $region17: #{roberta_base_model_forward.14} parent=15 // pred_check
        %p105 = pneg %p28
      $region18: #{roberta_base_model_forward.14} parent=15 // pred_check_branch
        %107 = sbr.rel (%p105) target = $region20
      $region19: #{roberta_base_model_forward.14} parent=15 // pred_region
        %p108 = scmp.lt.s32.totalorder %s8, 1
        %s109 = scalar_select %p108, %s8, 1
        %s110 = smul.addr %s109, 4
        %s111 = scalar_lea.vmem %s0, %s110
      $region20: #{roberta_base_model_forward.14} parent=15 // pred_fallthru
        _
      // Predicated region
      $region21: #{roberta_base_model_forward.14} parent=15 // pred_check
        %p112 = pneg %p54
      $region22: #{roberta_base_model_forward.14} parent=15 // pred_check_branch
        %114 = sbr.rel (%p112) target = $region24
      $region23: #{roberta_base_model_forward.14} parent=15 // pred_region
        %p115 = scmp.lt.s32.totalorder %s8, 1
        %s116 = scalar_select %p115, %s8, 1
        %s117 = scalar_lea.vmem %s1, %s116
      $region24: #{roberta_base_model_forward.14} parent=15 // pred_fallthru
        _
    $region16: #{roberta_base_model_forward.14} parent=5 // pred_fallthru
      _
    %p118 = scmp.le.s32.totalorder 1, %s8
    %p119 = scmp.lt.s32.totalorder %s8, 3
    %p120 = pnand %p118, %p119
    %p121 = pneg %p120
    // Predicated region
    $region25: #{roberta_base_model_forward.14} parent=5 // pred_check
      _
    $region26: #{roberta_base_model_forward.14} parent=5 // pred_check_branch
      %123 = sbr.rel (%p120) target = $region28
    $region27: #{roberta_base_model_forward.14} parent=5 // pred_region
      %s124 = ssub.s32 %s8, 1
      %p125 = scmp.lt.s32.totalorder %s13, 1
      %s126 = scalar_select %p125, %s13, 1
      %s127 = smul.addr %s126, 4
      %s128 = scalar_lea.vmem %s0, %s127
      %p129 = pneg %p34
      %p130 = pneg %p31
      %p131 = scmp.lt.s32.totalorder %s13, 1
      %s132 = scalar_select %p131, %s13, 1
      %s133 = scalar_lea.vmem %s1, %s132
      %p134 = pneg %p60
      %p135 = pneg %p57
      %p136 = pneg %p86
      %p137 = pneg %p83
      %p138 = scmp.lt.s32.totalorder %s13, 1
      %s139 = scalar_select %p138, %s13, 1
      %s140 = smul.addr %s139, 4
      %s141 = scalar_lea.vmem %s2, %s140
      %p142 = scmp.lt.s32.totalorder %s13, 1
      %s143 = scalar_select %p142, %s13, 1
      %s144 = smul.addr %s143, 4
      %s145 = scalar_lea.vmem %s0, %s144
      %p146 = scmp.lt.s32.totalorder %s13, 1
      %s147 = scalar_select %p146, %s13, 1
      %s148 = scalar_lea.vmem %s1, %s147
      %p149 = scmp.lt.s32.totalorder %s13, 1
      %s150 = scalar_select %p149, %s13, 1
      %s151 = smul.addr %s150, 4
      %s152 = scalar_lea.vmem %s2, %s151
      %v154 = vld [vmem:[%s148] sm:$0x1]
      %v155 = vld [vmem:[%s145] sm:$0xf]
      %v157 = vunpack.c.l.b16 %v155
      %v158 = vpack.c.b16 %v157, %v157
      %159 = vrot.lane.b32.xlu0 %v158, 96
      %v160 = vpop.permute.xlu0 %159
      %vm161 = vcmask 130048
      %v163 = vsel %vm161, %v155, 0
      %v166 = vsel %vm161, %v160, 0
      %168 = vmatprep.subr.bf16.mxu0 0
      %169 = vmatpush1.bf16.xpose.msra.mxu0 %v166
      %170 = vmatprep.subr.bf16.mxu0 0
      %171 = vmatpush1.bf16.xpose.msra.mxu0 0
      %172 = vmatprep.subr.bf16.mxu0 0
      %173 = vmatpush1.bf16.xpose.msra.mxu0 0
      %174 = vmatprep.subr.bf16.mxu0 0
      %175 = vmatpush1.bf16.xpose.msra.mxu0 0
      %176 = vmatprep.subr.bf16.mxu0 0
      %177 = vmatpush1.bf16.xpose.msra.mxu0 0
      %178 = vmatprep.subr.bf16.mxu0 0
      %179 = vmatpush1.bf16.xpose.msra.mxu0 0
      %180 = vmatprep.subr.bf16.mxu0 0
      %181 = vmatpush1.bf16.xpose.msra.mxu0 0
      %182 = vmatprep.subr.bf16.mxu0 0
      %183 = vmatpush1.bf16.xpose.msra.mxu0 0
      %184 = vmatprep.subr.bf16.mxu0 0
      %185 = vmatpush1.bf16.xpose.msra.mxu0 0
      %186 = vmatprep.subr.bf16.mxu0 0
      %187 = vmatpush1.bf16.xpose.msra.mxu0 0
      %188 = vmatprep.subr.bf16.mxu0 0
      %189 = vmatpush1.bf16.xpose.msra.mxu0 0
      %190 = vmatprep.subr.bf16.mxu0 0
      %191 = vmatpush1.bf16.xpose.msra.mxu0 0
      %192 = vmatprep.subr.bf16.mxu0 0
      %193 = vmatpush1.bf16.xpose.msra.mxu0 0
      %194 = vmatprep.subr.bf16.mxu0 0
      %195 = vmatpush1.bf16.xpose.msra.mxu0 0
      %196 = vmatprep.subr.bf16.mxu0 0
      %197 = vmatpush1.bf16.xpose.msra.mxu0 0
      %198 = vmatprep.subr.bf16.mxu0 0
      %199 = vmatpush1.bf16.xpose.msra.mxu0 0
      %200 = vmatprep.mubr.bf16.mxu0 0
      %201 = vmatmul.mubr.bf16.gmra.mrb[0].mxu0 %v163
      %v202 = vpop.f32.mrb[0].mxu0
      %v203 = vadd.f32 0.0, %v202
      %v204 = vpop.f32.mrb[0].mxu0
      %v205 = vpop.f32.mrb[0].mxu0
      %v206 = vpop.f32.mrb[0].mxu0
      %207 = vdwg.mxu0
      %v208 = vmul.f32 %v203, 0.25
      %v210 = vlaneseq
      %v211 = vshrl.u32 %v210, 7
      %v212 = vsub.s32 0, %v211
      %v213 = vrot.slane %v154, %v212
      %v215 = vadd.f32 %v208, %v213
      %vm216 = vcmask 64512
      %v217 = vsel %vm216, %v215, -inf
      %218 = vmax.xlane.f32.xlu0 %v217
      %v219 = vpop.xlane.xlu0 %218
      %v220 = vsub.f32 %v215, %v219
      %v221 = vmul.f32 %v220, 1.442695
      %v222 = vpow.pop %v221
      %v223 = vsel %vm216, %v222, 0.0
      %224 = vadd.xlane.f32.xlu0 %v223
      %v225 = vpop.xlane.xlu0 %224
      %v226 = vrcp.pop %v225
      %v227 = vmul.f32 %v222, %v226
      %v228 = vpack.c.bf16 %v227, %v227
      %229 = vrot.lane.b32.xlu0 %v158, 64
      %v230 = vpop.permute.xlu0 %229
      %v232 = vsel %vm216, %v228, 0
      %vm234 = vcmask 1043456
      %v236 = vsel %vm234, %v230, 0
      %238 = vmatprep.subr.bf16.mxu0 0
      %239 = vmatpush1.bf16.msra.mxu0 %v236
      %240 = vmatprep.subr.bf16.mxu0 0
      %241 = vmatpush1.bf16.msra.mxu0 0
      %242 = vmatprep.subr.bf16.mxu0 0
      %243 = vmatpush1.bf16.msra.mxu0 0
      %244 = vmatprep.subr.bf16.mxu0 0
      %245 = vmatpush1.bf16.msra.mxu0 0
      %246 = vmatprep.subr.bf16.mxu0 0
      %247 = vmatpush1.bf16.msra.mxu0 0
      %248 = vmatprep.subr.bf16.mxu0 0
      %249 = vmatpush1.bf16.msra.mxu0 0
      %250 = vmatprep.subr.bf16.mxu0 0
      %251 = vmatpush1.bf16.msra.mxu0 0
      %252 = vmatprep.subr.bf16.mxu0 0
      %253 = vmatpush1.bf16.msra.mxu0 0
      %254 = vmatprep.subr.bf16.mxu0 0
      %255 = vmatpush1.bf16.msra.mxu0 0
      %256 = vmatprep.subr.bf16.mxu0 0
      %257 = vmatpush1.bf16.msra.mxu0 0
      %258 = vmatprep.subr.bf16.mxu0 0
      %259 = vmatpush1.bf16.msra.mxu0 0
      %260 = vmatprep.subr.bf16.mxu0 0
      %261 = vmatpush1.bf16.msra.mxu0 0
      %262 = vmatprep.subr.bf16.mxu0 0
      %263 = vmatpush1.bf16.msra.mxu0 0
      %264 = vmatprep.subr.bf16.mxu0 0
      %265 = vmatpush1.bf16.msra.mxu0 0
      %266 = vmatprep.subr.bf16.mxu0 0
      %267 = vmatpush1.bf16.msra.mxu0 0
      %268 = vmatprep.subr.bf16.mxu0 0
      %269 = vmatpush1.bf16.msra.mxu0 0
      %270 = vmatprep.mubr.bf16.mxu0 0
      %271 = vmatmul.mubr.bf16.gmra.mrb[0].mxu0 %v232
      %v272 = vpop.f32.mrb[0].mxu0
      %v273 = vadd.f32 0.0, %v272
      %v274 = vpop.f32.mrb[0].mxu0
      %v275 = vpop.f32.mrb[0].mxu0
      %v276 = vpop.f32.mrb[0].mxu0
      %277 = vdwg.mxu0
      %278 = vrot.lane.b32.xlu0 %v158, 112
      %v279 = vpop.permute.xlu0 %278
      %280 = vrot.lane.b32.xlu0 %v158, 80
      %v281 = vpop.permute.xlu0 %280
      %v283 = vsel %vm161, %v279, 0
      %v286 = vsel %vm161, %v281, 0
      %288 = vmatprep.subr.bf16.mxu0 0
      %289 = vmatpush1.bf16.xpose.msra.mxu0 %v286
      %290 = vmatprep.subr.bf16.mxu0 0
      %291 = vmatpush1.bf16.xpose.msra.mxu0 0
      %292 = vmatprep.subr.bf16.mxu0 0
      %293 = vmatpush1.bf16.xpose.msra.mxu0 0
      %294 = vmatprep.subr.bf16.mxu0 0
      %295 = vmatpush1.bf16.xpose.msra.mxu0 0
      %296 = vmatprep.subr.bf16.mxu0 0
      %297 = vmatpush1.bf16.xpose.msra.mxu0 0
      %298 = vmatprep.subr.bf16.mxu0 0
      %299 = vmatpush1.bf16.xpose.msra.mxu0 0
      %300 = vmatprep.subr.bf16.mxu0 0
      %301 = vmatpush1.bf16.xpose.msra.mxu0 0
      %302 = vmatprep.subr.bf16.mxu0 0
      %303 = vmatpush1.bf16.xpose.msra.mxu0 0
      %304 = vmatprep.subr.bf16.mxu0 0
      %305 = vmatpush1.bf16.xpose.msra.mxu0 0
      %306 = vmatprep.subr.bf16.mxu0 0
      %307 = vmatpush1.bf16.xpose.msra.mxu0 0
      %308 = vmatprep.subr.bf16.mxu0 0
      %309 = vmatpush1.bf16.xpose.msra.mxu0 0
      %310 = vmatprep.subr.bf16.mxu0 0
      %311 = vmatpush1.bf16.xpose.msra.mxu0 0
      %312 = vmatprep.subr.bf16.mxu0 0
      %313 = vmatpush1.bf16.xpose.msra.mxu0 0
      %314 = vmatprep.subr.bf16.mxu0 0
      %315 = vmatpush1.bf16.xpose.msra.mxu0 0
      %316 = vmatprep.subr.bf16.mxu0 0
      %317 = vmatpush1.bf16.xpose.msra.mxu0 0
      %318 = vmatprep.subr.bf16.mxu0 0
      %319 = vmatpush1.bf16.xpose.msra.mxu0 0
      %320 = vmatprep.mubr.bf16.mxu0 0
      %321 = vmatmul.mubr.bf16.gmra.mrb[0].mxu0 %v283
      %v322 = vpop.f32.mrb[0].mxu0
      %v323 = vadd.f32 0.0, %v322
      %v324 = vpop.f32.mrb[0].mxu0
      %v325 = vpop.f32.mrb[0].mxu0
      %v326 = vpop.f32.mrb[0].mxu0
      %327 = vdwg.mxu0
      %v328 = vmul.f32 %v323, 0.25
      %v329 = vadd.f32 %v328, %v213
      %v330 = vsel %vm216, %v329, -inf
      %331 = vmax.xlane.f32.xlu0 %v330
      %v332 = vpop.xlane.xlu0 %331
      %v333 = vsub.f32 %v329, %v332
      %v334 = vmul.f32 %v333, 1.442695
      %v335 = vpow.pop %v334
      %v336 = vsel %vm216, %v335, 0.0
      %337 = vadd.xlane.f32.xlu0 %v336
      %v338 = vpop.xlane.xlu0 %337
      %v339 = vrcp.pop %v338
      %v340 = vmul.f32 %v335, %v339
      %v341 = vpack.c.bf16 %v340, %v340
      %342 = vrot.lane.b32.xlu0 %v158, 48
      %v343 = vpop.permute.xlu0 %342
      %v345 = vsel %vm216, %v341, 0
      %v348 = vsel %vm234, %v343, 0
      %350 = vmatprep.subr.bf16.mxu0 0
      %351 = vmatpush1.bf16.msra.mxu0 %v348
      %352 = vmatprep.subr.bf16.mxu0 0
      %353 = vmatpush1.bf16.msra.mxu0 0
      %354 = vmatprep.subr.bf16.mxu0 0
      %355 = vmatpush1.bf16.msra.mxu0 0
      %356 = vmatprep.subr.bf16.mxu0 0
      %357 = vmatpush1.bf16.msra.mxu0 0
      %358 = vmatprep.subr.bf16.mxu0 0
      %359 = vmatpush1.bf16.msra.mxu0 0
      %360 = vmatprep.subr.bf16.mxu0 0
      %361 = vmatpush1.bf16.msra.mxu0 0
      %362 = vmatprep.subr.bf16.mxu0 0
      %363 = vmatpush1.bf16.msra.mxu0 0
      %364 = vmatprep.subr.bf16.mxu0 0
      %365 = vmatpush1.bf16.msra.mxu0 0
      %366 = vmatprep.subr.bf16.mxu0 0
      %367 = vmatpush1.bf16.msra.mxu0 0
      %368 = vmatprep.subr.bf16.mxu0 0
      %369 = vmatpush1.bf16.msra.mxu0 0
      %370 = vmatprep.subr.bf16.mxu0 0
      %371 = vmatpush1.bf16.msra.mxu0 0
      %372 = vmatprep.subr.bf16.mxu0 0
      %373 = vmatpush1.bf16.msra.mxu0 0
      %374 = vmatprep.subr.bf16.mxu0 0
      %375 = vmatpush1.bf16.msra.mxu0 0
      %376 = vmatprep.subr.bf16.mxu0 0
      %377 = vmatpush1.bf16.msra.mxu0 0
      %378 = vmatprep.subr.bf16.mxu0 0
      %379 = vmatpush1.bf16.msra.mxu0 0
      %380 = vmatprep.subr.bf16.mxu0 0
      %381 = vmatpush1.bf16.msra.mxu0 0
      %382 = vmatprep.mubr.bf16.mxu0 0
      %383 = vmatmul.mubr.bf16.gmra.mrb[0].mxu0 %v345
      %v384 = vpop.f32.mrb[0].mxu0
      %v385 = vadd.f32 0.0, %v384
      %v386 = vpop.f32.mrb[0].mxu0
      %v387 = vpop.f32.mrb[0].mxu0
      %v388 = vpop.f32.mrb[0].mxu0
      %389 = vdwg.mxu0
      %391 = vrot.lane.b32.xlu0 %v385, 16
      %v392 = vpop.permute.xlu0 %391
      %v394 = vsel %vm161, %v273, %v392
      %v395 = vpack.c.bf16 %v394, %v394
      %vm396 = vcmask 257024
      %397 = vst.msk [vmem:[%s152] sm:$0xf] %vm396, %v395
      %p398 = scmp.lt.s32.totalorder %s13, 1
      %s399 = scalar_select %p398, %s13, 1
      %s400 = smul.addr %s399, 4
      %s401 = scalar_lea.vmem %s2, %s400
      // Predicated region
      $region29: #{roberta_base_model_forward.14} parent=27 // pred_check
        %p402 = pneg %p83
      $region30: #{roberta_base_model_forward.14} parent=27 // pred_check_branch
        %404 = sbr.rel (%p402) target = $region32
      $region31: #{roberta_base_model_forward.14} parent=27 // pred_region
        _
      $region32: #{roberta_base_model_forward.14} parent=27 // pred_fallthru
        _
    $region28: #{roberta_base_model_forward.14} parent=5 // pred_fallthru
      _
    %p405 = scmp.le.s32.totalorder 2, %s8
    // Predicated region
    $region33: #{roberta_base_model_forward.14} parent=5 // pred_check
      %p406 = pneg %p405
    $region34: #{roberta_base_model_forward.14} parent=5 // pred_check_branch
      %408 = sbr.rel (%p406) target = $region36
    $region35: #{roberta_base_model_forward.14} parent=5 // pred_region
      %s409 = ssub.s32 %s8, 2
      // Predicated region
      $region37: #{roberta_base_model_forward.14} parent=35 // pred_check
        %p410 = pneg %p89
      $region38: #{roberta_base_model_forward.14} parent=35 // pred_check_branch
        %412 = sbr.rel (%p410) target = $region40
      $region39: #{roberta_base_model_forward.14} parent=35 // pred_region
        %p413 = scmp.lt.s32.totalorder %s14, 1
        %s414 = scalar_select %p413, %s14, 1
        %s415 = smul.addr %s414, 4
        %s416 = scalar_lea.vmem %s2, %s415
      $region40: #{roberta_base_model_forward.14} parent=35 // pred_fallthru
        _
    $region36: #{roberta_base_model_forward.14} parent=5 // pred_fallthru
      _
  $region6: #{roberta_base_model_forward.14} parent=0 // loop_footer
    %s12 = sadd.s32 1, %s8
  $region7: #{roberta_base_model_forward.14} parent=0 // loop_footer_branch
    %7 = sbr.rel target = $region3
  $region8: #{roberta_base_model_forward.14} parent=0 // loop_exit
    _

// kernel: roberta_base_model_forward.15
$region0: #{roberta_base_model_forward.15}
  #allocation0 [shape = 'u32[]', space=smem, size = 0x4, offset = 0x4, fixed_abs, tag = 'smem constant byte address 0x4 - core index']
  #allocation1 [shape = 'u32[144,128]{1,0:T(1,128)}', space=vmem, size = 0x12000, scoped, tag = 'internal scratch']
  %s0 = inlined_call_operand.vmem [shape: bf16[16,32], index: 0, kind: input, shape index: {}]
  %s1 = inlined_call_operand.vmem [shape: bf16[32,32], index: 1, kind: input, shape index: {}]
  %s2 = inlined_call_operand.vmem [shape: f32[1,32], index: 2, kind: input, shape index: {}]
  %s3 = inlined_call_operand.vmem [shape: f32[16,32], index: 3, kind: input, shape index: {}]
  %s4 = inlined_call_operand.vmem [shape: f32[1,32], index: 4, kind: input, shape index: {}]
  %s5 = inlined_call_operand.vmem [shape: f32[1,32], index: 5, kind: input, shape index: {}]
  %s6 = inlined_call_operand.vmem [shape: f32[16,32], index: 6, kind: output, shape index: {}]
  %s7 = sld [smem:[#allocation0]]
  $region34: #{roberta_base_model_forward.15} parent=0
    _
  %s9 = ssub.s32 1, %s7
  %s10 = scalar_select 0, %s9, %s7
  // Predicated region
  $region2: #{roberta_base_model_forward.15} parent=0 // pred_check
    _
  $region3: #{roberta_base_model_forward.15} parent=0 // pred_check_branch
    %12 = sbr.rel (0) target = $region5
  $region4: #{roberta_base_model_forward.15} parent=0 // pred_region
    _
  $region5: #{roberta_base_model_forward.15} parent=0 // pred_fallthru
    _
  // Predicated region
  $region6: #{roberta_base_model_forward.15} parent=0 // pred_check
    _
  $region7: #{roberta_base_model_forward.15} parent=0 // pred_check_branch
    %14 = sbr.rel (0) target = $region9
  $region8: #{roberta_base_model_forward.15} parent=0 // pred_region
    _
  $region9: #{roberta_base_model_forward.15} parent=0 // pred_fallthru
    _
  // Predicated region
  $region10: #{roberta_base_model_forward.15} parent=0 // pred_check
    _
  $region11: #{roberta_base_model_forward.15} parent=0 // pred_check_branch
    %16 = sbr.rel (0) target = $region13
  $region12: #{roberta_base_model_forward.15} parent=0 // pred_region
    _
  $region13: #{roberta_base_model_forward.15} parent=0 // pred_fallthru
    _
  // Predicated region
  $region14: #{roberta_base_model_forward.15} parent=0 // pred_check
    _
  $region15: #{roberta_base_model_forward.15} parent=0 // pred_check_branch
    %18 = sbr.rel (0) target = $region17
  $region16: #{roberta_base_model_forward.15} parent=0 // pred_region
    _
  $region17: #{roberta_base_model_forward.15} parent=0 // pred_fallthru
    _
  // Predicated region
  $region18: #{roberta_base_model_forward.15} parent=0 // pred_check
    _
  $region19: #{roberta_base_model_forward.15} parent=0 // pred_check_branch
    %20 = sbr.rel (0) target = $region21
  $region20: #{roberta_base_model_forward.15} parent=0 // pred_region
    _
  $region21: #{roberta_base_model_forward.15} parent=0 // pred_fallthru
    _
  // Predicated region
  $region22: #{roberta_base_model_forward.15} parent=0 // pred_check
    _
  $region23: #{roberta_base_model_forward.15} parent=0 // pred_check_branch
    %22 = sbr.rel (0) target = $region25
  $region24: #{roberta_base_model_forward.15} parent=0 // pred_region
    _
  $region25: #{roberta_base_model_forward.15} parent=0 // pred_fallthru
    _
  %v24 = vld [vmem:[%s0] sm:$0xf]
  %v25 = vld [vmem:[%s0 + $0x4] sm:$0xf]
  %v26 = vld [vmem:[%s1] sm:$0xf]
  %v27 = vld [vmem:[%s1 + $0x4] sm:$0xf]
  %v28 = vld [vmem:[%s1 + $0x8] sm:$0xf]
  %v29 = vld [vmem:[%s1 + $0xc] sm:$0xf]
  %v30 = vld [vmem:[%s2] sm:$0x1]
  %v32 = vlaneseq
  %v33 = vshrl.u32 %v32, 7
  %v34 = vsub.s32 0, %v33
  %v35 = vrot.slane %v30, %v34
  %v39 = vunpack.c.l.b16 %v24
  %v40 = vunpack.c.l.b16 %v25
  %v41 = vpack.c.b16 %v40, %v39
  %v46 = vunpack.c.l.b16 %v26
  %v47 = vunpack.c.l.b16 %v27
  %v48 = vunpack.c.l.b16 %v28
  %v49 = vunpack.c.l.b16 %v29
  %v50 = vpack.c.b16 %v47, %v46
  %v51 = vpack.c.b16 %v49, %v48
  %vm54 = vcmask 261120
  %v56 = vsel %vm54, %v41, 0
  %58 = vmatprep.subr.bf16.mxu0 0
  %59 = vmatpush1.bf16.msra.mxu0 %v50
  %60 = vmatprep.subr.bf16.mxu0 0
  %61 = vmatpush1.bf16.msra.mxu0 %v51
  %62 = vmatprep.subr.bf16.mxu0 0
  %63 = vmatpush1.bf16.msra.mxu0 0
  %64 = vmatprep.subr.bf16.mxu0 0
  %65 = vmatpush1.bf16.msra.mxu0 0
  %66 = vmatprep.subr.bf16.mxu0 0
  %67 = vmatpush1.bf16.msra.mxu0 0
  %68 = vmatprep.subr.bf16.mxu0 0
  %69 = vmatpush1.bf16.msra.mxu0 0
  %70 = vmatprep.subr.bf16.mxu0 0
  %71 = vmatpush1.bf16.msra.mxu0 0
  %72 = vmatprep.subr.bf16.mxu0 0
  %73 = vmatpush1.bf16.msra.mxu0 0
  %74 = vmatprep.subr.bf16.mxu0 0
  %75 = vmatpush1.bf16.msra.mxu0 0
  %76 = vmatprep.subr.bf16.mxu0 0
  %77 = vmatpush1.bf16.msra.mxu0 0
  %78 = vmatprep.subr.bf16.mxu0 0
  %79 = vmatpush1.bf16.msra.mxu0 0
  %80 = vmatprep.subr.bf16.mxu0 0
  %81 = vmatpush1.bf16.msra.mxu0 0
  %82 = vmatprep.subr.bf16.mxu0 0
  %83 = vmatpush1.bf16.msra.mxu0 0
  %84 = vmatprep.subr.bf16.mxu0 0
  %85 = vmatpush1.bf16.msra.mxu0 0
  %86 = vmatprep.subr.bf16.mxu0 0
  %87 = vmatpush1.bf16.msra.mxu0 0
  %88 = vmatprep.subr.bf16.mxu0 0
  %89 = vmatpush1.bf16.msra.mxu0 0
  %90 = vmatprep.mubr.bf16.mxu0 0
  %91 = vmatmul.mubr.bf16.gmra.mrb[0].mxu0 %v56
  %v92 = vpop.f32.mrb[0].mxu0
  %v93 = vadd.f32 %v35, %v92
  %v94 = vpop.f32.mrb[0].mxu0
  %v95 = vpop.f32.mrb[0].mxu0
  %v96 = vadd.f32 %v35, %v95
  %v97 = vpop.f32.mrb[0].mxu0
  %98 = vdwg.mxu0
  %v99 = vld [vmem:[%s3] sm:$0xff]
  %v100 = vld [vmem:[%s3 + $0x8] sm:$0xff]
  %v101 = vadd.f32 %v93, %v99
  %v102 = vadd.f32 %v96, %v100
  %v103 = vsel %vm54, %v101, 0.0
  %104 = vadd.xlane.f32.xlu0 %v103
  %v105 = vpop.xlane.xlu0 %104
  %v106 = vsel %vm54, %v102, 0.0
  %107 = vadd.xlane.f32.xlu0 %v106
  %v108 = vpop.xlane.xlu0 %107
  %v109 = vrcp.pop 32.0
  %v110 = vmul.f32 %v105, %v109
  %v111 = vmul.f32 %v108, %v109
  %v112 = vsub.f32 %v101, %v110
  %v113 = vsub.f32 %v102, %v111
  %v114 = vmul.f32 %v112, %v112
  %v115 = vmul.f32 %v113, %v113
  %v116 = vsel %vm54, %v114, 0.0
  %117 = vadd.xlane.f32.xlu0 %v116
  %v118 = vpop.xlane.xlu0 %117
  %v119 = vsel %vm54, %v115, 0.0
  %120 = vadd.xlane.f32.xlu0 %v119
  %v121 = vpop.xlane.xlu0 %120
  %v122 = vmul.f32 %v118, %v109
  %v123 = vmul.f32 %v121, %v109
  %v124 = vadd.f32 %v122, 1e-05
  %v125 = vadd.f32 %v123, 1e-05
  %v126 = vrsqrt.pop %v124
  %v127 = vrsqrt.pop %v125
  %v128 = vmul.f32 %v112, %v126
  %v129 = vmul.f32 %v113, %v127
  %v130 = vld [vmem:[%s4] sm:$0x1]
  %v132 = vlaneseq
  %v133 = vshrl.u32 %v132, 7
  %v134 = vsub.s32 0, %v133
  %v135 = vrot.slane %v130, %v134
  %v137 = vmul.f32 %v128, %v135
  %v138 = vmul.f32 %v129, %v135
  %v139 = vld [vmem:[%s5] sm:$0x1]
  %v141 = vlaneseq
  %v142 = vshrl.u32 %v141, 7
  %v143 = vsub.s32 0, %v142
  %v144 = vrot.slane %v139, %v143
  %v146 = vadd.f32 %v137, %v144
  %v147 = vadd.f32 %v138, %v144
  %148 = vst.msk [vmem:[%s6] sm:$0xff] %vm54, %v146
  %149 = vst.msk [vmem:[%s6 + $0x8] sm:$0xff] %vm54, %v147
  // Predicated region
  $region26: #{roberta_base_model_forward.15} parent=0 // pred_check
    _
  $region27: #{roberta_base_model_forward.15} parent=0 // pred_check_branch
    %151 = sbr.rel (0) target = $region29
  $region28: #{roberta_base_model_forward.15} parent=0 // pred_region
    _
  $region29: #{roberta_base_model_forward.15} parent=0 // pred_fallthru
    _
  // Predicated region
  $region30: #{roberta_base_model_forward.15} parent=0 // pred_check
    _
  $region31: #{roberta_base_model_forward.15} parent=0 // pred_check_branch
    %153 = sbr.rel (0) target = $region33
  $region32: #{roberta_base_model_forward.15} parent=0 // pred_region
    _
  $region33: #{roberta_base_model_forward.15} parent=0 // pred_fallthru
    _

// kernel: roberta_base_model_forward.17
$region0: #{roberta_base_model_forward.17}
  #allocation0 [shape = 'u32[]', space=smem, size = 0x4, offset = 0x4, fixed_abs, tag = 'smem constant byte address 0x4 - core index']
  #allocation1 [shape = 'u32[144,128]{1,0:T(1,128)}', space=vmem, size = 0x12000, scoped, tag = 'internal scratch']
  %s0 = inlined_call_operand.vmem [shape: bf16[16,64], index: 0, kind: input, shape index: {}]
  %s1 = inlined_call_operand.vmem [shape: bf16[64,32], index: 1, kind: input, shape index: {}]
  %s2 = inlined_call_operand.vmem [shape: f32[1,32], index: 2, kind: input, shape index: {}]
  %s3 = inlined_call_operand.vmem [shape: f32[16,32], index: 3, kind: input, shape index: {}]
  %s4 = inlined_call_operand.vmem [shape: f32[1,32], index: 4, kind: input, shape index: {}]
  %s5 = inlined_call_operand.vmem [shape: f32[1,32], index: 5, kind: input, shape index: {}]
  %s6 = inlined_call_operand.vmem [shape: f32[16,32], index: 6, kind: output, shape index: {}]
  %s7 = sld [smem:[#allocation0]]
  $region34: #{roberta_base_model_forward.17} parent=0
    _
  %s9 = ssub.s32 1, %s7
  %s10 = scalar_select 0, %s9, %s7
  // Predicated region
  $region2: #{roberta_base_model_forward.17} parent=0 // pred_check
    _
  $region3: #{roberta_base_model_forward.17} parent=0 // pred_check_branch
    %12 = sbr.rel (0) target = $region5
  $region4: #{roberta_base_model_forward.17} parent=0 // pred_region
    _
  $region5: #{roberta_base_model_forward.17} parent=0 // pred_fallthru
    _
  // Predicated region
  $region6: #{roberta_base_model_forward.17} parent=0 // pred_check
    _
  $region7: #{roberta_base_model_forward.17} parent=0 // pred_check_branch
    %14 = sbr.rel (0) target = $region9
  $region8: #{roberta_base_model_forward.17} parent=0 // pred_region
    _
  $region9: #{roberta_base_model_forward.17} parent=0 // pred_fallthru
    _
  // Predicated region
  $region10: #{roberta_base_model_forward.17} parent=0 // pred_check
    _
  $region11: #{roberta_base_model_forward.17} parent=0 // pred_check_branch
    %16 = sbr.rel (0) target = $region13
  $region12: #{roberta_base_model_forward.17} parent=0 // pred_region
    _
  $region13: #{roberta_base_model_forward.17} parent=0 // pred_fallthru
    _
  // Predicated region
  $region14: #{roberta_base_model_forward.17} parent=0 // pred_check
    _
  $region15: #{roberta_base_model_forward.17} parent=0 // pred_check_branch
    %18 = sbr.rel (0) target = $region17
  $region16: #{roberta_base_model_forward.17} parent=0 // pred_region
    _
  $region17: #{roberta_base_model_forward.17} parent=0 // pred_fallthru
    _
  // Predicated region
  $region18: #{roberta_base_model_forward.17} parent=0 // pred_check
    _
  $region19: #{roberta_base_model_forward.17} parent=0 // pred_check_branch
    %20 = sbr.rel (0) target = $region21
  $region20: #{roberta_base_model_forward.17} parent=0 // pred_region
    _
  $region21: #{roberta_base_model_forward.17} parent=0 // pred_fallthru
    _
  // Predicated region
  $region22: #{roberta_base_model_forward.17} parent=0 // pred_check
    _
  $region23: #{roberta_base_model_forward.17} parent=0 // pred_check_branch
    %22 = sbr.rel (0) target = $region25
  $region24: #{roberta_base_model_forward.17} parent=0 // pred_region
    _
  $region25: #{roberta_base_model_forward.17} parent=0 // pred_fallthru
    _
  %v24 = vld [vmem:[%s0] sm:$0xf]
  %v25 = vld [vmem:[%s0 + $0x4] sm:$0xf]
  %v26 = vld [vmem:[%s1] sm:$0xf]
  %v27 = vld [vmem:[%s1 + $0x4] sm:$0xf]
  %v28 = vld [vmem:[%s1 + $0x8] sm:$0xf]
  %v29 = vld [vmem:[%s1 + $0xc] sm:$0xf]
  %v30 = vld [vmem:[%s1 + $0x10] sm:$0xf]
  %v31 = vld [vmem:[%s1 + $0x14] sm:$0xf]
  %v32 = vld [vmem:[%s1 + $0x18] sm:$0xf]
  %v33 = vld [vmem:[%s1 + $0x1c] sm:$0xf]
  %v34 = vld [vmem:[%s2] sm:$0x1]
  %v36 = vlaneseq
  %v37 = vshrl.u32 %v36, 7
  %v38 = vsub.s32 0, %v37
  %v39 = vrot.slane %v34, %v38
  %v43 = vunpack.c.l.b16 %v24
  %v44 = vunpack.c.l.b16 %v25
  %v45 = vpack.c.b16 %v44, %v43
  %v54 = vunpack.c.l.b16 %v26
  %v55 = vunpack.c.l.b16 %v27
  %v56 = vunpack.c.l.b16 %v28
  %v57 = vunpack.c.l.b16 %v29
  %v58 = vunpack.c.l.b16 %v30
  %v59 = vunpack.c.l.b16 %v31
  %v60 = vunpack.c.l.b16 %v32
  %v61 = vunpack.c.l.b16 %v33
  %v62 = vpack.c.b16 %v55, %v54
  %v63 = vpack.c.b16 %v57, %v56
  %v64 = vpack.c.b16 %v59, %v58
  %v65 = vpack.c.b16 %v61, %v60
  %vm70 = vcmask 523264
  %v72 = vsel %vm70, %v45, 0
  %74 = vmatprep.subr.bf16.mxu0 0
  %75 = vmatpush1.bf16.msra.mxu0 %v62
  %76 = vmatprep.subr.bf16.mxu0 0
  %77 = vmatpush1.bf16.msra.mxu0 %v63
  %78 = vmatprep.subr.bf16.mxu0 0
  %79 = vmatpush1.bf16.msra.mxu0 %v64
  %80 = vmatprep.subr.bf16.mxu0 0
  %81 = vmatpush1.bf16.msra.mxu0 %v65
  %82 = vmatprep.subr.bf16.mxu0 0
  %83 = vmatpush1.bf16.msra.mxu0 0
  %84 = vmatprep.subr.bf16.mxu0 0
  %85 = vmatpush1.bf16.msra.mxu0 0
  %86 = vmatprep.subr.bf16.mxu0 0
  %87 = vmatpush1.bf16.msra.mxu0 0
  %88 = vmatprep.subr.bf16.mxu0 0
  %89 = vmatpush1.bf16.msra.mxu0 0
  %90 = vmatprep.subr.bf16.mxu0 0
  %91 = vmatpush1.bf16.msra.mxu0 0
  %92 = vmatprep.subr.bf16.mxu0 0
  %93 = vmatpush1.bf16.msra.mxu0 0
  %94 = vmatprep.subr.bf16.mxu0 0
  %95 = vmatpush1.bf16.msra.mxu0 0
  %96 = vmatprep.subr.bf16.mxu0 0
  %97 = vmatpush1.bf16.msra.mxu0 0
  %98 = vmatprep.subr.bf16.mxu0 0
  %99 = vmatpush1.bf16.msra.mxu0 0
  %100 = vmatprep.subr.bf16.mxu0 0
  %101 = vmatpush1.bf16.msra.mxu0 0
  %102 = vmatprep.subr.bf16.mxu0 0
  %103 = vmatpush1.bf16.msra.mxu0 0
  %104 = vmatprep.subr.bf16.mxu0 0
  %105 = vmatpush1.bf16.msra.mxu0 0
  %106 = vmatprep.mubr.bf16.mxu0 0
  %107 = vmatmul.mubr.bf16.gmra.mrb[0].mxu0 %v72
  %v108 = vpop.f32.mrb[0].mxu0
  %v109 = vadd.f32 %v39, %v108
  %v110 = vpop.f32.mrb[0].mxu0
  %v111 = vpop.f32.mrb[0].mxu0
  %v112 = vadd.f32 %v39, %v111
  %v113 = vpop.f32.mrb[0].mxu0
  %114 = vdwg.mxu0
  %v115 = vld [vmem:[%s3] sm:$0xff]
  %v116 = vld [vmem:[%s3 + $0x8] sm:$0xff]
  %v117 = vadd.f32 %v109, %v115
  %v118 = vadd.f32 %v112, %v116
  %vm119 = vcmask 261120
  %v120 = vsel %vm119, %v117, 0.0
  %121 = vadd.xlane.f32.xlu0 %v120
  %v122 = vpop.xlane.xlu0 %121
  %v123 = vsel %vm119, %v118, 0.0
  %124 = vadd.xlane.f32.xlu0 %v123
  %v125 = vpop.xlane.xlu0 %124
  %v126 = vrcp.pop 32.0
  %v127 = vmul.f32 %v122, %v126
  %v128 = vmul.f32 %v125, %v126
  %v129 = vsub.f32 %v117, %v127
  %v130 = vsub.f32 %v118, %v128
  %v131 = vmul.f32 %v129, %v129
  %v132 = vmul.f32 %v130, %v130
  %v133 = vsel %vm119, %v131, 0.0
  %134 = vadd.xlane.f32.xlu0 %v133
  %v135 = vpop.xlane.xlu0 %134
  %v136 = vsel %vm119, %v132, 0.0
  %137 = vadd.xlane.f32.xlu0 %v136
  %v138 = vpop.xlane.xlu0 %137
  %v139 = vmul.f32 %v135, %v126
  %v140 = vmul.f32 %v138, %v126
  %v141 = vadd.f32 %v139, 1e-05
  %v142 = vadd.f32 %v140, 1e-05
  %v143 = vrsqrt.pop %v141
  %v144 = vrsqrt.pop %v142
  %v145 = vmul.f32 %v129, %v143
  %v146 = vmul.f32 %v130, %v144
  %v147 = vld [vmem:[%s4] sm:$0x1]
  %v149 = vlaneseq
  %v150 = vshrl.u32 %v149, 7
  %v151 = vsub.s32 0, %v150
  %v152 = vrot.slane %v147, %v151
  %v154 = vmul.f32 %v145, %v152
  %v155 = vmul.f32 %v146, %v152
  %v156 = vld [vmem:[%s5] sm:$0x1]
  %v158 = vlaneseq
  %v159 = vshrl.u32 %v158, 7
  %v160 = vsub.s32 0, %v159
  %v161 = vrot.slane %v156, %v160
  %v163 = vadd.f32 %v154, %v161
  %v164 = vadd.f32 %v155, %v161
  %165 = vst.msk [vmem:[%s6] sm:$0xff] %vm119, %v163
  %166 = vst.msk [vmem:[%s6 + $0x8] sm:$0xff] %vm119, %v164
  // Predicated region
  $region26: #{roberta_base_model_forward.17} parent=0 // pred_check
    _
  $region27: #{roberta_base_model_forward.17} parent=0 // pred_check_branch
    %168 = sbr.rel (0) target = $region29
  $region28: #{roberta_base_model_forward.17} parent=0 // pred_region
    _
  $region29: #{roberta_base_model_forward.17} parent=0 // pred_fallthru
    _
  // Predicated region
  $region30: #{roberta_base_model_forward.17} parent=0 // pred_check
    _
  $region31: #{roberta_base_model_forward.17} parent=0 // pred_check_branch
    %170 = sbr.rel (0) target = $region33
  $region32: #{roberta_base_model_forward.17} parent=0 // pred_region
    _
  $region33: #{roberta_base_model_forward.17} parent=0 // pred_fallthru
    _

// kernel: roberta_base_model_forward.16
$region0: #{roberta_base_model_forward.16}
  #allocation0 [shape = 'u32[]', space=smem, size = 0x4, offset = 0x4, fixed_abs, tag = 'smem constant byte address 0x4 - core index']
  #allocation1 [shape = 'u32[144,128]{1,0:T(1,128)}', space=vmem, size = 0x12000, scoped, tag = 'internal scratch']
  %s0 = inlined_call_operand.vmem [shape: f32[16,32], index: 0, kind: input, shape index: {}]
  %s1 = inlined_call_operand.vmem [shape: bf16[32,64], index: 1, kind: input, shape index: {}]
  %s2 = inlined_call_operand.vmem [shape: f32[1,64], index: 2, kind: input, shape index: {}]
  %s3 = inlined_call_operand.vmem [shape: bf16[16,64], index: 3, kind: output, shape index: {}]
  %s4 = sld [smem:[#allocation0]]
  $region22: #{roberta_base_model_forward.16} parent=0
    _
  %s6 = ssub.s32 1, %s4
  %s7 = scalar_select 0, %s6, %s4
  // Predicated region
  $region2: #{roberta_base_model_forward.16} parent=0 // pred_check
    _
  $region3: #{roberta_base_model_forward.16} parent=0 // pred_check_branch
    %9 = sbr.rel (0) target = $region5
  $region4: #{roberta_base_model_forward.16} parent=0 // pred_region
    _
  $region5: #{roberta_base_model_forward.16} parent=0 // pred_fallthru
    _
  // Predicated region
  $region6: #{roberta_base_model_forward.16} parent=0 // pred_check
    _
  $region7: #{roberta_base_model_forward.16} parent=0 // pred_check_branch
    %11 = sbr.rel (0) target = $region9
  $region8: #{roberta_base_model_forward.16} parent=0 // pred_region
    _
  $region9: #{roberta_base_model_forward.16} parent=0 // pred_fallthru
    _
  // Predicated region
  $region10: #{roberta_base_model_forward.16} parent=0 // pred_check
    _
  $region11: #{roberta_base_model_forward.16} parent=0 // pred_check_branch
    %13 = sbr.rel (0) target = $region13
  $region12: #{roberta_base_model_forward.16} parent=0 // pred_region
    _
  $region13: #{roberta_base_model_forward.16} parent=0 // pred_fallthru
    _
  %v15 = vld [vmem:[%s0] sm:$0xff]
  %v16 = vld [vmem:[%s0 + $0x8] sm:$0xff]
  %v17 = vpack.c.bf16 %v16, %v15
  %v18 = vld [vmem:[%s1] sm:$0xf]
  %v19 = vld [vmem:[%s1 + $0x4] sm:$0xf]
  %v20 = vld [vmem:[%s1 + $0x8] sm:$0xf]
  %v21 = vld [vmem:[%s1 + $0xc] sm:$0xf]
  %v22 = vld [vmem:[%s2] sm:$0x1]
  %v24 = vlaneseq
  %v25 = vshrl.u32 %v24, 7
  %v26 = vsub.s32 0, %v25
  %v27 = vrot.slane %v22, %v26
  %v33 = vunpack.c.l.b16 %v18
  %v34 = vunpack.c.l.b16 %v19
  %v35 = vunpack.c.l.b16 %v20
  %v36 = vunpack.c.l.b16 %v21
  %v37 = vpack.c.b16 %v34, %v33
  %v38 = vpack.c.b16 %v36, %v35
  %vm41 = vcmask 261120
  %v43 = vsel %vm41, %v17, 0
  %45 = vmatprep.subr.bf16.mxu0 0
  %46 = vmatpush1.bf16.msra.mxu0 %v37
  %47 = vmatprep.subr.bf16.mxu0 0
  %48 = vmatpush1.bf16.msra.mxu0 %v38
  %49 = vmatprep.subr.bf16.mxu0 0
  %50 = vmatpush1.bf16.msra.mxu0 0
  %51 = vmatprep.subr.bf16.mxu0 0
  %52 = vmatpush1.bf16.msra.mxu0 0
  %53 = vmatprep.subr.bf16.mxu0 0
  %54 = vmatpush1.bf16.msra.mxu0 0
  %55 = vmatprep.subr.bf16.mxu0 0
  %56 = vmatpush1.bf16.msra.mxu0 0
  %57 = vmatprep.subr.bf16.mxu0 0
  %58 = vmatpush1.bf16.msra.mxu0 0
  %59 = vmatprep.subr.bf16.mxu0 0
  %60 = vmatpush1.bf16.msra.mxu0 0
  %61 = vmatprep.subr.bf16.mxu0 0
  %62 = vmatpush1.bf16.msra.mxu0 0
  %63 = vmatprep.subr.bf16.mxu0 0
  %64 = vmatpush1.bf16.msra.mxu0 0
  %65 = vmatprep.subr.bf16.mxu0 0
  %66 = vmatpush1.bf16.msra.mxu0 0
  %67 = vmatprep.subr.bf16.mxu0 0
  %68 = vmatpush1.bf16.msra.mxu0 0
  %69 = vmatprep.subr.bf16.mxu0 0
  %70 = vmatpush1.bf16.msra.mxu0 0
  %71 = vmatprep.subr.bf16.mxu0 0
  %72 = vmatpush1.bf16.msra.mxu0 0
  %73 = vmatprep.subr.bf16.mxu0 0
  %74 = vmatpush1.bf16.msra.mxu0 0
  %75 = vmatprep.subr.bf16.mxu0 0
  %76 = vmatpush1.bf16.msra.mxu0 0
  %77 = vmatprep.mubr.bf16.mxu0 0
  %78 = vmatmul.mubr.bf16.gmra.mrb[0].mxu0 %v43
  %v79 = vpop.f32.mrb[0].mxu0
  %v80 = vadd.f32 %v27, %v79
  %v81 = vpop.f32.mrb[0].mxu0
  %v82 = vpop.f32.mrb[0].mxu0
  %v83 = vadd.f32 %v27, %v82
  %v84 = vpop.f32.mrb[0].mxu0
  %85 = vdwg.mxu0
  %v86 = vmul.f32 %v80, %v80
  %v87 = vmul.f32 %v83, %v83
  %v88 = vmul.f32 %v80, %v86
  %v89 = vmul.f32 %v83, %v87
  %v90 = vmul.f32 %v88, 0.044715
  %v91 = vmul.f32 %v89, 0.044715
  %v92 = vadd.f32 %v80, %v90
  %v93 = vadd.f32 %v83, %v91
  %v94 = vmul.f32 %v92, 0.7978846
  %v95 = vmul.f32 %v93, 0.7978846
  %v96 = vtanh.pop %v94
  %v97 = vtanh.pop %v95
  %v98 = vadd.f32 %v96, 1.0
  %v99 = vadd.f32 %v97, 1.0
  %v100 = vmul.f32 %v98, 0.5
  %v101 = vmul.f32 %v99, 0.5
  %v102 = vmul.f32 %v80, %v100
  %v103 = vmul.f32 %v83, %v101
  %v104 = vpack.c.bf16 %v103, %v102
  %v106 = vunpack.c.l.b16 %v104
  %v107 = vunpack.c.h.b16 %v104
  %v108 = vpack.c.b16 %v106, %v106
  %v109 = vpack.c.b16 %v107, %v107
  %vm112 = vcmask 519168
  %113 = vst.msk [vmem:[%s3] sm:$0xf] %vm112, %v108
  %114 = vst.msk [vmem:[%s3 + $0x4] sm:$0xf] %vm112, %v109
  // Predicated region
  $region14: #{roberta_base_model_forward.16} parent=0 // pred_check
    _
  $region15: #{roberta_base_model_forward.16} parent=0 // pred_check_branch
    %116 = sbr.rel (0) target = $region17
  $region16: #{roberta_base_model_forward.16} parent=0 // pred_region
    _
  $region17: #{roberta_base_model_forward.16} parent=0 // pred_fallthru
    _
  // Predicated region
  $region18: #{roberta_base_model_forward.16} parent=0 // pred_check
    _
  $region19: #{roberta_base_model_forward.16} parent=0 // pred_check_branch
    %118 = sbr.rel (0) target = $region21
  $region20: #{roberta_base_model_forward.16} parent=0 // pred_region
    _
  $region21: #{roberta_base_model_forward.16} parent=0 // pred_fallthru
    _

// kernel: roberta_base_model_forward.23
$region0: #{roberta_base_model_forward.23}
  #allocation0 [shape = 'u32[]', space=smem, size = 0x4, offset = 0x4, fixed_abs, tag = 'smem constant byte address 0x4 - core index']
  #allocation1 [shape = 'u32[144,128]{1,0:T(1,128)}', space=vmem, size = 0x12000, scoped, tag = 'internal scratch']
  %s0 = inlined_call_operand.vmem [shape: f32[2,48], index: 0, kind: input, shape index: {}]
  %s1 = inlined_call_operand.vmem [shape: bf16[48,32], index: 1, kind: input, shape index: {}]
  %s2 = inlined_call_operand.vmem [shape: f32[1,32], index: 2, kind: input, shape index: {}]
  %s3 = inlined_call_operand.vmem [shape: f32[2,8,32], index: 3, kind: input, shape index: {}]
  %s4 = inlined_call_operand.vmem [shape: bf16[32,32], index: 4, kind: input, shape index: {}]
  %s5 = inlined_call_operand.vmem [shape: f32[2,32], index: 5, kind: input, shape index: {}]
  %s6 = inlined_call_operand.vmem [shape: bf16[32,2], index: 6, kind: input, shape index: {}]
  %s7 = inlined_call_operand.vmem [shape: bf16[32,2], index: 7, kind: input, shape index: {}]
  %s8 = inlined_call_operand.vmem [shape: f32[1,2], index: 8, kind: input, shape index: {}]
  %s9 = inlined_call_operand.hbm [shape: f32[2,2], index: 9, kind: output, shape index: {}]
  %s10 = sld [smem:[#allocation0]]
  $region46: #{roberta_base_model_forward.23} parent=0
    _
  %s12 = ssub.s32 1, %s10
  %s13 = scalar_select 0, %s12, %s10
  $region1: #{roberta_base_model_forward.23} parent=0
    #allocation2 [shape = 'u8[1024]{0}', space=vmem, size = 0x400, scoped, tag = 'output window, operand 0, single buffered']
    #allocation3 [shape = 's32[1]{0}', space=sflag, size = 0x4, scoped, tag = 'scoped memory for roberta_base_model_forward.23']
    %14 = vsyncpa [#allocation3], 0
    // Predicated region
    $region2: #{roberta_base_model_forward.23} parent=1 // pred_check
      _
    $region3: #{roberta_base_model_forward.23} parent=1 // pred_check_branch
      %16 = sbr.rel (0) target = $region5
    $region4: #{roberta_base_model_forward.23} parent=1 // pred_region
      _
    $region5: #{roberta_base_model_forward.23} parent=1 // pred_fallthru
      _
    // Predicated region
    $region6: #{roberta_base_model_forward.23} parent=1 // pred_check
      _
    $region7: #{roberta_base_model_forward.23} parent=1 // pred_check_branch
      %18 = sbr.rel (0) target = $region9
    $region8: #{roberta_base_model_forward.23} parent=1 // pred_region
      _
    $region9: #{roberta_base_model_forward.23} parent=1 // pred_fallthru
      _
    // Predicated region
    $region10: #{roberta_base_model_forward.23} parent=1 // pred_check
      _
    $region11: #{roberta_base_model_forward.23} parent=1 // pred_check_branch
      %20 = sbr.rel (0) target = $region13
    $region12: #{roberta_base_model_forward.23} parent=1 // pred_region
      _
    $region13: #{roberta_base_model_forward.23} parent=1 // pred_fallthru
      _
    // Predicated region
    $region14: #{roberta_base_model_forward.23} parent=1 // pred_check
      _
    $region15: #{roberta_base_model_forward.23} parent=1 // pred_check_branch
      %22 = sbr.rel (0) target = $region17
    $region16: #{roberta_base_model_forward.23} parent=1 // pred_region
      _
    $region17: #{roberta_base_model_forward.23} parent=1 // pred_fallthru
      _
    // Predicated region
    $region18: #{roberta_base_model_forward.23} parent=1 // pred_check
      _
    $region19: #{roberta_base_model_forward.23} parent=1 // pred_check_branch
      %24 = sbr.rel (0) target = $region21
    $region20: #{roberta_base_model_forward.23} parent=1 // pred_region
      _
    $region21: #{roberta_base_model_forward.23} parent=1 // pred_fallthru
      _
    // Predicated region
    $region22: #{roberta_base_model_forward.23} parent=1 // pred_check
      _
    $region23: #{roberta_base_model_forward.23} parent=1 // pred_check_branch
      %26 = sbr.rel (0) target = $region25
    $region24: #{roberta_base_model_forward.23} parent=1 // pred_region
      _
    $region25: #{roberta_base_model_forward.23} parent=1 // pred_fallthru
      _
    // Predicated region
    $region26: #{roberta_base_model_forward.23} parent=1 // pred_check
      _
    $region27: #{roberta_base_model_forward.23} parent=1 // pred_check_branch
      %28 = sbr.rel (0) target = $region29
    $region28: #{roberta_base_model_forward.23} parent=1 // pred_region
      _
    $region29: #{roberta_base_model_forward.23} parent=1 // pred_fallthru
      _
    // Predicated region
    $region30: #{roberta_base_model_forward.23} parent=1 // pred_check
      _
    $region31: #{roberta_base_model_forward.23} parent=1 // pred_check_branch
      %30 = sbr.rel (0) target = $region33
    $region32: #{roberta_base_model_forward.23} parent=1 // pred_region
      _
    $region33: #{roberta_base_model_forward.23} parent=1 // pred_fallthru
      _
    // Predicated region
    $region34: #{roberta_base_model_forward.23} parent=1 // pred_check
      _
    $region35: #{roberta_base_model_forward.23} parent=1 // pred_check_branch
      %32 = sbr.rel (0) target = $region37
    $region36: #{roberta_base_model_forward.23} parent=1 // pred_region
      _
    $region37: #{roberta_base_model_forward.23} parent=1 // pred_fallthru
      _
    %v34 = vld [vmem:[%s0] sm:$0x3]
    %v35 = vpack.c.bf16 %v34, %v34
    %v36 = vld [vmem:[%s1] sm:$0xf]
    %v37 = vld [vmem:[%s1 + $0x4] sm:$0xf]
    %v38 = vld [vmem:[%s1 + $0x8] sm:$0xf]
    %v39 = vld [vmem:[%s1 + $0xc] sm:$0xf]
    %v40 = vld [vmem:[%s1 + $0x10] sm:$0xf]
    %v41 = vld [vmem:[%s1 + $0x14] sm:$0xf]
    %v42 = vld [vmem:[%s2] sm:$0x1]
    %v44 = vlaneseq
    %v45 = vshrl.u32 %v44, 7
    %v46 = vsub.s32 0, %v45
    %v47 = vrot.slane %v42, %v46
    %v55 = vunpack.c.l.b16 %v36
    %v56 = vunpack.c.l.b16 %v37
    %v57 = vunpack.c.l.b16 %v38
    %v58 = vunpack.c.l.b16 %v39
    %v59 = vunpack.c.l.b16 %v40
    %v60 = vunpack.c.l.b16 %v41
    %v61 = vpack.c.b16 %v56, %v55
    %v62 = vpack.c.b16 %v58, %v57
    %v63 = vpack.c.b16 %v60, %v59
    %vm67 = vcmask 392192
    %v69 = vsel %vm67, %v35, 0
    %71 = vmatprep.subr.bf16.mxu0 0
    %72 = vmatpush1.bf16.msra.mxu0 %v61
    %73 = vmatprep.subr.bf16.mxu0 0
    %74 = vmatpush1.bf16.msra.mxu0 %v62
    %75 = vmatprep.subr.bf16.mxu0 0
    %76 = vmatpush1.bf16.msra.mxu0 %v63
    %77 = vmatprep.subr.bf16.mxu0 0
    %78 = vmatpush1.bf16.msra.mxu0 0
    %79 = vmatprep.subr.bf16.mxu0 0
    %80 = vmatpush1.bf16.msra.mxu0 0
    %81 = vmatprep.subr.bf16.mxu0 0
    %82 = vmatpush1.bf16.msra.mxu0 0
    %83 = vmatprep.subr.bf16.mxu0 0
    %84 = vmatpush1.bf16.msra.mxu0 0
    %85 = vmatprep.subr.bf16.mxu0 0
    %86 = vmatpush1.bf16.msra.mxu0 0
    %87 = vmatprep.subr.bf16.mxu0 0
    %88 = vmatpush1.bf16.msra.mxu0 0
    %89 = vmatprep.subr.bf16.mxu0 0
    %90 = vmatpush1.bf16.msra.mxu0 0
    %91 = vmatprep.subr.bf16.mxu0 0
    %92 = vmatpush1.bf16.msra.mxu0 0
    %93 = vmatprep.subr.bf16.mxu0 0
    %94 = vmatpush1.bf16.msra.mxu0 0
    %95 = vmatprep.subr.bf16.mxu0 0
    %96 = vmatpush1.bf16.msra.mxu0 0
    %97 = vmatprep.subr.bf16.mxu0 0
    %98 = vmatpush1.bf16.msra.mxu0 0
    %99 = vmatprep.subr.bf16.mxu0 0
    %100 = vmatpush1.bf16.msra.mxu0 0
    %101 = vmatprep.subr.bf16.mxu0 0
    %102 = vmatpush1.bf16.msra.mxu0 0
    %103 = vmatprep.mubr.bf16.mxu0 0
    %104 = vmatmul.mubr.bf16.gmra.mrb[0].mxu0 %v69
    %v105 = vpop.f32.mrb[0].mxu0
    %v106 = vadd.f32 %v47, %v105
    %v107 = vpop.f32.mrb[0].mxu0
    %v108 = vpop.f32.mrb[0].mxu0
    %v109 = vpop.f32.mrb[0].mxu0
    %110 = vdwg.mxu0
    %v111 = vpack.c.bf16 %v106, %v106
    %v112 = vld [vmem:[%s4] sm:$0xf]
    %v113 = vld [vmem:[%s4 + $0x4] sm:$0xf]
    %v114 = vld [vmem:[%s4 + $0x8] sm:$0xf]
    %v115 = vld [vmem:[%s4 + $0xc] sm:$0xf]
    %v120 = vunpack.c.l.b16 %v112
    %v121 = vunpack.c.l.b16 %v113
    %v122 = vunpack.c.l.b16 %v114
    %v123 = vunpack.c.l.b16 %v115
    %v124 = vpack.c.b16 %v121, %v120
    %v125 = vpack.c.b16 %v123, %v122
    %vm128 = vcmask 261120
    %v130 = vsel %vm128, %v111, 0
    %132 = vmatprep.subr.bf16.mxu0 0
    %133 = vmatpush1.bf16.msra.mxu0 %v124
    %134 = vmatprep.subr.bf16.mxu0 0
    %135 = vmatpush1.bf16.msra.mxu0 %v125
    %136 = vmatprep.subr.bf16.mxu0 0
    %137 = vmatpush1.bf16.msra.mxu0 0
    %138 = vmatprep.subr.bf16.mxu0 0
    %139 = vmatpush1.bf16.msra.mxu0 0
    %140 = vmatprep.subr.bf16.mxu0 0
    %141 = vmatpush1.bf16.msra.mxu0 0
    %142 = vmatprep.subr.bf16.mxu0 0
    %143 = vmatpush1.bf16.msra.mxu0 0
    %144 = vmatprep.subr.bf16.mxu0 0
    %145 = vmatpush1.bf16.msra.mxu0 0
    %146 = vmatprep.subr.bf16.mxu0 0
    %147 = vmatpush1.bf16.msra.mxu0 0
    %148 = vmatprep.subr.bf16.mxu0 0
    %149 = vmatpush1.bf16.msra.mxu0 0
    %150 = vmatprep.subr.bf16.mxu0 0
    %151 = vmatpush1.bf16.msra.mxu0 0
    %152 = vmatprep.subr.bf16.mxu0 0
    %153 = vmatpush1.bf16.msra.mxu0 0
    %154 = vmatprep.subr.bf16.mxu0 0
    %155 = vmatpush1.bf16.msra.mxu0 0
    %156 = vmatprep.subr.bf16.mxu0 0
    %157 = vmatpush1.bf16.msra.mxu0 0
    %158 = vmatprep.subr.bf16.mxu0 0
    %159 = vmatpush1.bf16.msra.mxu0 0
    %160 = vmatprep.subr.bf16.mxu0 0
    %161 = vmatpush1.bf16.msra.mxu0 0
    %162 = vmatprep.subr.bf16.mxu0 0
    %163 = vmatpush1.bf16.msra.mxu0 0
    %164 = vmatprep.mubr.bf16.mxu0 0
    %165 = vmatmul.mubr.bf16.gmra.mrb[0].mxu0 %v130
    %v166 = vpop.f32.mrb[0].mxu0
    %v167 = vadd.f32 0.0, %v166
    %v168 = vpop.f32.mrb[0].mxu0
    %v169 = vpop.f32.mrb[0].mxu0
    %v170 = vpop.f32.mrb[0].mxu0
    %171 = vdwg.mxu0
    %v174 = vunpack.c.l.s4 1966171168
    %v175 = vunpack.c.0.s8 %v174
    %v176 = vlaneseq
    %v177 = vshrl.u32 %v176, 7
    %v178 = vsub.s32 %v175, %v177
    %v179 = vrot.slane %v167, %v178
    %v180 = vcombine.high %v179, %v179
    %v182 = vunpack.c.l.s4 1966171168
    %v183 = vunpack.c.0.s8 %v182
    %v184 = vlaneseq
    %v185 = vshrl.u32 %v184, 7
    %v186 = vsub.s32 %v183, %v185
    %v187 = vrot.slane %v179, %v186
    %v189 = vunpack.c.l.s4 1966171168
    %v190 = vunpack.c.0.s8 %v189
    %v191 = vlaneseq
    %v192 = vshrl.u32 %v191, 7
    %v193 = vsub.s32 %v190, %v192
    %v194 = vrot.slane %v180, %v193
    %v197 = vld [vmem:[%s3] sm:$0xff]
    %v198 = vld [vmem:[%s3 + $0x8] sm:$0xff]
    %v199 = vpack.c.bf16 %v197, %v197
    %v200 = vpack.c.bf16 %v198, %v198
    %v201 = vpack.c.bf16 %v187, %v187
    %v202 = vpack.c.bf16 %v194, %v194
    %v204 = vsel %vm128, %v201, 0
    %v207 = vsel %vm128, %v199, 0
    %209 = vmatprep.subr.bf16.mxu0 0
    %210 = vmatpush1.bf16.xpose.msra.mxu0 %v207
    %211 = vmatprep.subr.bf16.mxu0 0
    %212 = vmatpush1.bf16.xpose.msra.mxu0 0
    %213 = vmatprep.subr.bf16.mxu0 0
    %214 = vmatpush1.bf16.xpose.msra.mxu0 0
    %215 = vmatprep.subr.bf16.mxu0 0
    %216 = vmatpush1.bf16.xpose.msra.mxu0 0
    %217 = vmatprep.subr.bf16.mxu0 0
    %218 = vmatpush1.bf16.xpose.msra.mxu0 0
    %219 = vmatprep.subr.bf16.mxu0 0
    %220 = vmatpush1.bf16.xpose.msra.mxu0 0
    %221 = vmatprep.subr.bf16.mxu0 0
    %222 = vmatpush1.bf16.xpose.msra.mxu0 0
    %223 = vmatprep.subr.bf16.mxu0 0
    %224 = vmatpush1.bf16.xpose.msra.mxu0 0
    %225 = vmatprep.subr.bf16.mxu0 0
    %226 = vmatpush1.bf16.xpose.msra.mxu0 0
    %227 = vmatprep.subr.bf16.mxu0 0
    %228 = vmatpush1.bf16.xpose.msra.mxu0 0
    %229 = vmatprep.subr.bf16.mxu0 0
    %230 = vmatpush1.bf16.xpose.msra.mxu0 0
    %231 = vmatprep.subr.bf16.mxu0 0
    %232 = vmatpush1.bf16.xpose.msra.mxu0 0
    %233 = vmatprep.subr.bf16.mxu0 0
    %234 = vmatpush1.bf16.xpose.msra.mxu0 0
    %235 = vmatprep.subr.bf16.mxu0 0
    %236 = vmatpush1.bf16.xpose.msra.mxu0 0
    %237 = vmatprep.subr.bf16.mxu0 0
    %238 = vmatpush1.bf16.xpose.msra.mxu0 0
    %239 = vmatprep.subr.bf16.mxu0 0
    %240 = vmatpush1.bf16.xpose.msra.mxu0 0
    %241 = vmatprep.mubr.bf16.mxu0 0
    %242 = vmatmul.mubr.bf16.gmra.mrb[0].mxu0 %v204
    %v243 = vpop.f32.mrb[0].mxu0
    %v244 = vadd.f32 0.0, %v243
    %v245 = vpop.f32.mrb[0].mxu0
    %v246 = vpop.f32.mrb[0].mxu0
    %v247 = vpop.f32.mrb[0].mxu0
    %248 = vdwg.mxu0
    %v250 = vsel %vm128, %v202, 0
    %v253 = vsel %vm128, %v200, 0
    %255 = vmatprep.subr.bf16.mxu0 0
    %256 = vmatpush1.bf16.xpose.msra.mxu0 %v253
    %257 = vmatprep.subr.bf16.mxu0 0
    %258 = vmatpush1.bf16.xpose.msra.mxu0 0
    %259 = vmatprep.subr.bf16.mxu0 0
    %260 = vmatpush1.bf16.xpose.msra.mxu0 0
    %261 = vmatprep.subr.bf16.mxu0 0
    %262 = vmatpush1.bf16.xpose.msra.mxu0 0
    %263 = vmatprep.subr.bf16.mxu0 0
    %264 = vmatpush1.bf16.xpose.msra.mxu0 0
    %265 = vmatprep.subr.bf16.mxu0 0
    %266 = vmatpush1.bf16.xpose.msra.mxu0 0
    %267 = vmatprep.subr.bf16.mxu0 0
    %268 = vmatpush1.bf16.xpose.msra.mxu0 0
    %269 = vmatprep.subr.bf16.mxu0 0
    %270 = vmatpush1.bf16.xpose.msra.mxu0 0
    %271 = vmatprep.subr.bf16.mxu0 0
    %272 = vmatpush1.bf16.xpose.msra.mxu0 0
    %273 = vmatprep.subr.bf16.mxu0 0
    %274 = vmatpush1.bf16.xpose.msra.mxu0 0
    %275 = vmatprep.subr.bf16.mxu0 0
    %276 = vmatpush1.bf16.xpose.msra.mxu0 0
    %277 = vmatprep.subr.bf16.mxu0 0
    %278 = vmatpush1.bf16.xpose.msra.mxu0 0
    %279 = vmatprep.subr.bf16.mxu0 0
    %280 = vmatpush1.bf16.xpose.msra.mxu0 0
    %281 = vmatprep.subr.bf16.mxu0 0
    %282 = vmatpush1.bf16.xpose.msra.mxu0 0
    %283 = vmatprep.subr.bf16.mxu0 0
    %284 = vmatpush1.bf16.xpose.msra.mxu0 0
    %285 = vmatprep.subr.bf16.mxu0 0
    %286 = vmatpush1.bf16.xpose.msra.mxu0 0
    %287 = vmatprep.mubr.bf16.mxu0 0
    %288 = vmatmul.mubr.bf16.gmra.mrb[0].mxu0 %v250
    %v289 = vpop.f32.mrb[0].mxu0
    %v290 = vadd.f32 0.0, %v289
    %v291 = vpop.f32.mrb[0].mxu0
    %v292 = vpop.f32.mrb[0].mxu0
    %v293 = vpop.f32.mrb[0].mxu0
    %294 = vdwg.mxu0
    %v295 = vmul.f32 %v244, 0.17677669
    %v296 = vmul.f32 %v290, 0.17677669
    %vm297 = vcmask 57344
    %v298 = vsel %vm297, %v295, -inf
    %299 = vmax.xlane.f32.xlu0 %v298
    %v300 = vpop.xlane.xlu0 %299
    %v301 = vsel %vm297, %v296, -inf
    %302 = vmax.xlane.f32.xlu0 %v301
    %v303 = vpop.xlane.xlu0 %302
    %v304 = vsub.f32 %v295, %v300
    %v305 = vsub.f32 %v296, %v303
    %v306 = vmul.f32 %v304, 1.442695
    %v307 = vpow.pop %v306
    %v308 = vmul.f32 %v305, 1.442695
    %v309 = vpow.pop %v308
    %v310 = vsel %vm297, %v307, 0.0
    %311 = vadd.xlane.f32.xlu0 %v310
    %v312 = vpop.xlane.xlu0 %311
    %v313 = vsel %vm297, %v309, 0.0
    %314 = vadd.xlane.f32.xlu0 %v313
    %v315 = vpop.xlane.xlu0 %314
    %v316 = vrcp.pop %v312
    %v317 = vrcp.pop %v315
    %v318 = vmul.f32 %v307, %v316
    %v319 = vmul.f32 %v309, %v317
    %v320 = vpack.c.bf16 %v318, %v318
    %v321 = vpack.c.bf16 %v319, %v319
    %vm322 = vcmask 64512
    %v324 = vsel %vm322, %v320, 0
    %vm326 = vcmask 1043456
    %v327 = vsel %vm326, %v199, 0
    %329 = vmatprep.subr.bf16.mxu0 0
    %330 = vmatpush1.bf16.msra.mxu0 %v327
    %331 = vmatprep.subr.bf16.mxu0 0
    %332 = vmatpush1.bf16.msra.mxu0 0
    %333 = vmatprep.subr.bf16.mxu0 0
    %334 = vmatpush1.bf16.msra.mxu0 0
    %335 = vmatprep.subr.bf16.mxu0 0
    %336 = vmatpush1.bf16.msra.mxu0 0
    %337 = vmatprep.subr.bf16.mxu0 0
    %338 = vmatpush1.bf16.msra.mxu0 0
    %339 = vmatprep.subr.bf16.mxu0 0
    %340 = vmatpush1.bf16.msra.mxu0 0
    %341 = vmatprep.subr.bf16.mxu0 0
    %342 = vmatpush1.bf16.msra.mxu0 0
    %343 = vmatprep.subr.bf16.mxu0 0
    %344 = vmatpush1.bf16.msra.mxu0 0
    %345 = vmatprep.subr.bf16.mxu0 0
    %346 = vmatpush1.bf16.msra.mxu0 0
    %347 = vmatprep.subr.bf16.mxu0 0
    %348 = vmatpush1.bf16.msra.mxu0 0
    %349 = vmatprep.subr.bf16.mxu0 0
    %350 = vmatpush1.bf16.msra.mxu0 0
    %351 = vmatprep.subr.bf16.mxu0 0
    %352 = vmatpush1.bf16.msra.mxu0 0
    %353 = vmatprep.subr.bf16.mxu0 0
    %354 = vmatpush1.bf16.msra.mxu0 0
    %355 = vmatprep.subr.bf16.mxu0 0
    %356 = vmatpush1.bf16.msra.mxu0 0
    %357 = vmatprep.subr.bf16.mxu0 0
    %358 = vmatpush1.bf16.msra.mxu0 0
    %359 = vmatprep.subr.bf16.mxu0 0
    %360 = vmatpush1.bf16.msra.mxu0 0
    %361 = vmatprep.mubr.bf16.mxu0 0
    %362 = vmatmul.mubr.bf16.gmra.mrb[0].mxu0 %v324
    %v363 = vpop.f32.mrb[0].mxu0
    %v364 = vadd.f32 0.0, %v363
    %v365 = vpop.f32.mrb[0].mxu0
    %v366 = vpop.f32.mrb[0].mxu0
    %v367 = vpop.f32.mrb[0].mxu0
    %368 = vdwg.mxu0
    %v370 = vsel %vm322, %v321, 0
    %v372 = vsel %vm326, %v200, 0
    %374 = vmatprep.subr.bf16.mxu0 0
    %375 = vmatpush1.bf16.msra.mxu0 %v372
    %376 = vmatprep.subr.bf16.mxu0 0
    %377 = vmatpush1.bf16.msra.mxu0 0
    %378 = vmatprep.subr.bf16.mxu0 0
    %379 = vmatpush1.bf16.msra.mxu0 0
    %380 = vmatprep.subr.bf16.mxu0 0
    %381 = vmatpush1.bf16.msra.mxu0 0
    %382 = vmatprep.subr.bf16.mxu0 0
    %383 = vmatpush1.bf16.msra.mxu0 0
    %384 = vmatprep.subr.bf16.mxu0 0
    %385 = vmatpush1.bf16.msra.mxu0 0
    %386 = vmatprep.subr.bf16.mxu0 0
    %387 = vmatpush1.bf16.msra.mxu0 0
    %388 = vmatprep.subr.bf16.mxu0 0
    %389 = vmatpush1.bf16.msra.mxu0 0
    %390 = vmatprep.subr.bf16.mxu0 0
    %391 = vmatpush1.bf16.msra.mxu0 0
    %392 = vmatprep.subr.bf16.mxu0 0
    %393 = vmatpush1.bf16.msra.mxu0 0
    %394 = vmatprep.subr.bf16.mxu0 0
    %395 = vmatpush1.bf16.msra.mxu0 0
    %396 = vmatprep.subr.bf16.mxu0 0
    %397 = vmatpush1.bf16.msra.mxu0 0
    %398 = vmatprep.subr.bf16.mxu0 0
    %399 = vmatpush1.bf16.msra.mxu0 0
    %400 = vmatprep.subr.bf16.mxu0 0
    %401 = vmatpush1.bf16.msra.mxu0 0
    %402 = vmatprep.subr.bf16.mxu0 0
    %403 = vmatpush1.bf16.msra.mxu0 0
    %404 = vmatprep.subr.bf16.mxu0 0
    %405 = vmatpush1.bf16.msra.mxu0 0
    %406 = vmatprep.mubr.bf16.mxu0 0
    %407 = vmatmul.mubr.bf16.gmra.mrb[0].mxu0 %v370
    %v408 = vpop.f32.mrb[0].mxu0
    %v409 = vadd.f32 0.0, %v408
    %v410 = vpop.f32.mrb[0].mxu0
    %v411 = vpop.f32.mrb[0].mxu0
    %v412 = vpop.f32.mrb[0].mxu0
    %413 = vdwg.mxu0
    %v414 = vpack.c.bf16 %v364, %v364
    %v415 = vpack.c.bf16 %v409, %v409
    %v416 = vld [vmem:[%s6] sm:$0xf]
    %v417 = vld [vmem:[%s6 + $0x4] sm:$0xf]
    %v418 = vld [vmem:[%s6 + $0x8] sm:$0xf]
    %v419 = vld [vmem:[%s6 + $0xc] sm:$0xf]
    %v420 = vld [vmem:[%s5] sm:$0x3]
    %v421 = vpack.c.bf16 %v420, %v420
    %v422 = vld [vmem:[%s7] sm:$0xf]
    %v423 = vld [vmem:[%s7 + $0x4] sm:$0xf]
    %v424 = vld [vmem:[%s7 + $0x8] sm:$0xf]
    %v425 = vld [vmem:[%s7 + $0xc] sm:$0xf]
    %v430 = vunpack.c.l.b16 %v422
    %v431 = vunpack.c.l.b16 %v423
    %v432 = vunpack.c.l.b16 %v424
    %v433 = vunpack.c.l.b16 %v425
    %v434 = vpack.c.b16 %v431, %v430
    %v435 = vpack.c.b16 %v433, %v432
    %v439 = vsel %vm128, %v421, 0
    %441 = vmatprep.subr.bf16.mxu0 0
    %442 = vmatpush1.bf16.msra.mxu0 %v434
    %443 = vmatprep.subr.bf16.mxu0 0
    %444 = vmatpush1.bf16.msra.mxu0 %v435
    %445 = vmatprep.subr.bf16.mxu0 0
    %446 = vmatpush1.bf16.msra.mxu0 0
    %447 = vmatprep.subr.bf16.mxu0 0
    %448 = vmatpush1.bf16.msra.mxu0 0
    %449 = vmatprep.subr.bf16.mxu0 0
    %450 = vmatpush1.bf16.msra.mxu0 0
    %451 = vmatprep.subr.bf16.mxu0 0
    %452 = vmatpush1.bf16.msra.mxu0 0
    %453 = vmatprep.subr.bf16.mxu0 0
    %454 = vmatpush1.bf16.msra.mxu0 0
    %455 = vmatprep.subr.bf16.mxu0 0
    %456 = vmatpush1.bf16.msra.mxu0 0
    %457 = vmatprep.subr.bf16.mxu0 0
    %458 = vmatpush1.bf16.msra.mxu0 0
    %459 = vmatprep.subr.bf16.mxu0 0
    %460 = vmatpush1.bf16.msra.mxu0 0
    %461 = vmatprep.subr.bf16.mxu0 0
    %462 = vmatpush1.bf16.msra.mxu0 0
    %463 = vmatprep.subr.bf16.mxu0 0
    %464 = vmatpush1.bf16.msra.mxu0 0
    %465 = vmatprep.subr.bf16.mxu0 0
    %466 = vmatpush1.bf16.msra.mxu0 0
    %467 = vmatprep.subr.bf16.mxu0 0
    %468 = vmatpush1.bf16.msra.mxu0 0
    %469 = vmatprep.subr.bf16.mxu0 0
    %470 = vmatpush1.bf16.msra.mxu0 0
    %471 = vmatprep.subr.bf16.mxu0 0
    %472 = vmatpush1.bf16.msra.mxu0 0
    %473 = vmatprep.mubr.bf16.mxu0 0
    %474 = vmatmul.mubr.bf16.gmra.mrb[0].mxu0 %v439
    %v475 = vpop.f32.mrb[0].mxu0
    %v476 = vadd.f32 0.0, %v475
    %v477 = vpop.f32.mrb[0].mxu0
    %v478 = vpop.f32.mrb[0].mxu0
    %v479 = vpop.f32.mrb[0].mxu0
    %480 = vdwg.mxu0
    %v483 = vunpack.c.l.b16 %v414
    %v484 = vunpack.c.l.b16 %v415
    %v485 = vrot.slane %v484, 7
    %vm486 = vcmask 1041409
    %v487 = vsel %vm486, %v485, %v483
    %v488 = vpack.c.b16 %v487, %v487
    %v493 = vunpack.c.l.b16 %v416
    %v494 = vunpack.c.l.b16 %v417
    %v495 = vunpack.c.l.b16 %v418
    %v496 = vunpack.c.l.b16 %v419
    %v497 = vpack.c.b16 %v494, %v493
    %v498 = vpack.c.b16 %v496, %v495
    %v502 = vsel %vm128, %v488, 0
    %504 = vmatprep.subr.bf16.mxu0 0
    %505 = vmatpush1.bf16.msra.mxu0 %v497
    %506 = vmatprep.subr.bf16.mxu0 0
    %507 = vmatpush1.bf16.msra.mxu0 %v498
    %508 = vmatprep.subr.bf16.mxu0 0
    %509 = vmatpush1.bf16.msra.mxu0 0
    %510 = vmatprep.subr.bf16.mxu0 0
    %511 = vmatpush1.bf16.msra.mxu0 0
    %512 = vmatprep.subr.bf16.mxu0 0
    %513 = vmatpush1.bf16.msra.mxu0 0
    %514 = vmatprep.subr.bf16.mxu0 0
    %515 = vmatpush1.bf16.msra.mxu0 0
    %516 = vmatprep.subr.bf16.mxu0 0
    %517 = vmatpush1.bf16.msra.mxu0 0
    %518 = vmatprep.subr.bf16.mxu0 0
    %519 = vmatpush1.bf16.msra.mxu0 0
    %520 = vmatprep.subr.bf16.mxu0 0
    %521 = vmatpush1.bf16.msra.mxu0 0
    %522 = vmatprep.subr.bf16.mxu0 0
    %523 = vmatpush1.bf16.msra.mxu0 0
    %524 = vmatprep.subr.bf16.mxu0 0
    %525 = vmatpush1.bf16.msra.mxu0 0
    %526 = vmatprep.subr.bf16.mxu0 0
    %527 = vmatpush1.bf16.msra.mxu0 0
    %528 = vmatprep.subr.bf16.mxu0 0
    %529 = vmatpush1.bf16.msra.mxu0 0
    %530 = vmatprep.subr.bf16.mxu0 0
    %531 = vmatpush1.bf16.msra.mxu0 0
    %532 = vmatprep.subr.bf16.mxu0 0
    %533 = vmatpush1.bf16.msra.mxu0 0
    %534 = vmatprep.subr.bf16.mxu0 0
    %535 = vmatpush1.bf16.msra.mxu0 0
    %536 = vmatprep.mubr.bf16.mxu0 0
    %537 = vmatmul.mubr.bf16.gmra.mrb[0].mxu0 %v502
    %v538 = vpop.f32.mrb[0].mxu0
    %v539 = vadd.f32 %v476, %v538
    %v540 = vpop.f32.mrb[0].mxu0
    %v541 = vpop.f32.mrb[0].mxu0
    %v542 = vpop.f32.mrb[0].mxu0
    %543 = vdwg.mxu0
    %v544 = vld [vmem:[%s8] sm:$0x1]
    %v546 = vlaneseq
    %v547 = vshrl.u32 %v546, 7
    %v548 = vsub.s32 0, %v547
    %v549 = vrot.slane %v544, %v548
    %v551 = vadd.f32 %v539, %v549
    %vm552 = vcmask 9216
    %553 = vst.msk [vmem:[#allocation2] sm:$0x3] %vm552, %v551
    // Predicated region
    $region38: #{roberta_base_model_forward.23} parent=1 // pred_check
      _
    $region39: #{roberta_base_model_forward.23} parent=1 // pred_check_branch
      %555 = sbr.rel (0) target = $region41
    $region40: #{roberta_base_model_forward.23} parent=1 // pred_region
      %s557 = ssub.s32 32, 32
      %558 = vsyncadd [#allocation3], %s557
      %s560 = sshll.u32 [#allocation2], 4
      %s561 = int_to_ptr.vmem [resolvable:$true] %s560
      %563 = dma.vmem_to_hbm [thread:$0]  %s561, 32, %s9, [#allocation3]
    $region41: #{roberta_base_model_forward.23} parent=1 // pred_fallthru
      _
    // Predicated region
    $region42: #{roberta_base_model_forward.23} parent=1 // pred_check
      _
    $region43: #{roberta_base_model_forward.23} parent=1 // pred_check_branch
      %565 = sbr.rel (0) target = $region45
    $region44: #{roberta_base_model_forward.23} parent=1 // pred_region
      %566 = dma.done [#allocation3], 32
    $region45: #{roberta_base_model_forward.23} parent=1 // pred_fallthru
      _
    %567 = vsyncpa [#allocation3], 1

</llo_original>
